<compile_context>
chip_gen: v7x
topology: tpu7x:2x2x1
jax: 0.10.0
libtpu: 0.0.40
codegen_flags: <defaults>
</compile_context>

<pallas_src>
import jax
import jax.numpy as jnp
from jax import lax
from jax.experimental import pallas as pl
from jax.experimental.pallas import tpu as pltpu


def _crf_kernel(logits_ref, tags_ref, mask_ref, trans_t_ref, start_ref, end_ref,
                out_ref, alpha_scr, ohprev_scr, lastoh_scr, acc_scr):
    # Block shapes (batch on lanes):
    #   logits : (TC, NT, TB) f32      tags : (TC, TB) i32    mask : (TC, TB) f32
    #   trans_t: (NT, NT) f32  (= transitions.T)
    #   start/end: (NT, 1) f32         out  : (1, TB) f32
    # Scratch (persists across the T-chunk axis):
    #   alpha_scr / ohprev_scr / lastoh_scr : (NT, TB) f32,  acc_scr : (1, TB) f32
    TC, NT, TB = logits_ref.shape
    c = pl.program_id(1)
    n_chunks = pl.num_programs(1)
    t0 = c * TC

    trans_t = trans_t_ref[...]                       # trans_t[j, i] = transitions[i, j]
    start_col = start_ref[...]                       # (NT, 1)
    end_col = end_ref[...]                           # (NT, 1)

    # Hoisted loop-invariants.
    c_col = jnp.max(trans_t, axis=1, keepdims=True)            # (NT, 1): per-destination-tag max
    exp_trans_t = jnp.exp(trans_t - c_col)                     # (NT, NT), values in (0, 1]
    nt_iota = lax.broadcasted_iota(jnp.int32, (NT, TB), 0)     # (NT, TB)

    def onehot(tag_row):                                        # tag_row: (1, TB) int32
        return (nt_iota == tag_row).astype(jnp.float32)         # (NT, TB)

    # ---- chunk 0: initialise the state carried across T-chunks (global t = 0) ----
    @pl.when(c == 0)
    def _():
        oh0 = onehot(tags_ref[pl.ds(0, 1), :])
        alpha_scr[...] = start_col + logits_ref[0]              # unconditional, as in AllenNLP
        ohprev_scr[...] = oh0
        lastoh_scr[...] = jnp.zeros_like(lastoh_scr)
        # start_transitions[tags[0]]  (added unconditionally)
        acc_scr[...] = jnp.sum(start_col * oh0, axis=0, keepdims=True)

    def step(t, carry):
        alpha, oh_prev, last_oh, acc = carry
        gt = t0 + t                                              # global time step
        is_t0 = gt == 0                                          # step 0 already initialised above

        logit_t = logits_ref[t]                                  # (NT, TB) leading-axis view
        tag_t = tags_ref[pl.ds(t, 1), :]                         # (1, TB)
        mask_t = mask_ref[pl.ds(t, 1), :]                        # (1, TB) in {0, 1}
        oh_t = onehot(tag_t)                                     # (NT, TB)

        # ---------------- numerator (streamed) ----------------
        emit_b = jnp.sum(logit_t * oh_t, axis=0, keepdims=True)                 # logits[t, tags[t]]
        proj = jnp.dot(trans_t, oh_prev, preferred_element_type=jnp.float32)    # MXU, (NT, TB)
        trans_b = jnp.sum(proj * oh_t, axis=0, keepdims=True)                   # trans[tags[t-1], tags[t]]
        acc = acc + (emit_b + jnp.where(is_t0, 0.0, trans_b)) * mask_t

        # -------- denominator: alpha recurrence (exp-matmul logsumexp) --------
        m = jnp.max(alpha, axis=0, keepdims=True)                               # (1, TB)
        z = jnp.dot(exp_trans_t, jnp.exp(alpha - m),
                    preferred_element_type=jnp.float32)                         # MXU, (NT, TB)
        # Guard: exp underflow with pathological (hard-constraint) transitions.
        rec = logit_t + m + c_col + jnp.log(jnp.maximum(z, 1e-30))
        blended = jnp.where(mask_t != 0.0, rec, alpha)
        alpha = jnp.where(is_t0, alpha, blended)

        last_oh = jnp.where(mask_t != 0.0, oh_t, last_oh)        # tag at most recent valid step
        return alpha, oh_t, last_oh, acc

    carry0 = (alpha_scr[...], ohprev_scr[...], lastoh_scr[...], acc_scr[...])
    # Full unroll only for short chunks; bounded unroll keeps code size / vreg
    # live ranges sane for long sequences while preserving LLO visibility.
    unroll = True if TC <= 32 else 4
    # TODO(synk): for TB >= 256, split the lane axis into 2-4 independent
    # 128-lane alpha chains inside this loop to overlap the serial
    # exp -> MXU -> log dependency chains of different sub-batches.
    alpha, oh_prev, last_oh, acc = lax.fori_loop(0, TC, step, carry0, unroll=unroll)

    # ---- carry the state to the next T-chunk ----
    alpha_scr[...] = alpha
    ohprev_scr[...] = oh_prev
    lastoh_scr[...] = last_oh
    acc_scr[...] = acc

    # ---- finalize on the last chunk (lane-dense (1, TB) store) ----
    @pl.when(c == n_chunks - 1)
    def _():
        end_b = jnp.sum(last_oh * end_col, axis=0, keepdims=True)               # end[last_tag]
        numerator = acc + end_b
        stops = alpha + end_col
        mx = jnp.max(stops, axis=0, keepdims=True)
        denom = mx + jnp.log(jnp.sum(jnp.exp(stops - mx), axis=0, keepdims=True))
        out_ref[...] = numerator - denom


def _round_up(x, m):
    return ((x + m - 1) // m) * m


def _vmem_bytes(tb, tc, nt):
    """Rough per-grid-step resident VMEM estimate (double-buffered pipeline)."""
    lanes = _round_up(tb, 128)
    logits = tc * _round_up(nt, 8) * lanes * 4
    tag_or_mask = _round_up(tc, 8) * lanes * 4
    params = (_round_up(nt, 8) * _round_up(nt, 128) + 2 * _round_up(nt, 8) * 128) * 4
    out = 8 * lanes * 4
    scratch = (3 * _round_up(nt, 8) * lanes + 8 * lanes) * 4
    return 2 * (logits + 2 * tag_or_mask + params + out) + scratch


def _choose_tiles(B, T, NT, batch_tile, t_chunk, budget=48 * 1024 * 1024):
    # Batch tile: must divide B and be a multiple of 128 lanes (or equal B).
    if batch_tile is not None and B % batch_tile == 0 and (batch_tile == B or batch_tile % 128 == 0):
        tb = batch_tile
    elif B % 128 == 0 and B >= 256:
        tb = 128            # >= 2 batch grid steps so both v7x TensorCores get work
    else:
        tb = B
    # Time chunk: must divide T and be a multiple of 8 sublanes (or equal T).
    if t_chunk is not None and T % t_chunk == 0 and (t_chunk == T or t_chunk % 8 == 0):
        tc = t_chunk
    else:
        tc = T
        while (_vmem_bytes(tb, tc, NT) > budget and tc % 2 == 0
               and tc >= 16 and (tc // 2) % 8 == 0):
            tc //= 2
    return tb, tc


def crf_log_likelihood(logits, tags, mask, transitions, start_transitions,
                       end_transitions, *, batch_tile=None, t_chunk=None):
    """Sum over batch of log P(y|x), matching ConditionalRandomField.forward."""
    B, T, NT = logits.shape

    # Wrapper-side layout plumbing: batch on the lane axis everywhere.
    logits_t = jnp.transpose(logits.astype(jnp.float32), (1, 2, 0))      # (T, NT, B)
    tags_t = jnp.transpose(tags.astype(jnp.int32), (1, 0))               # (T, B)
    mask_t = jnp.transpose(mask.astype(jnp.float32), (1, 0))             # (T, B)
    trans_t = jnp.transpose(transitions.astype(jnp.float32), (1, 0))     # (NT, NT), [j,i]=trans[i,j]
    start_col = start_transitions.astype(jnp.float32).reshape(NT, 1)
    end_col = end_transitions.astype(jnp.float32).reshape(NT, 1)

    TB, TC = _choose_tiles(B, T, NT, batch_tile, t_chunk)
    grid = (B // TB, T // TC)          # (parallel batch tiles, sequential T-chunks)

    out = pl.pallas_call(
        _crf_kernel,
        out_shape=jax.ShapeDtypeStruct((1, B), jnp.float32),
        grid_spec=pltpu.PrefetchScalarGridSpec(
            num_scalar_prefetch=0,
            grid=grid,
            in_specs=[
                pl.BlockSpec((TC, NT, TB), lambda i, c: (c, 0, i)),
                pl.BlockSpec((TC, TB), lambda i, c: (c, i)),
                pl.BlockSpec((TC, TB), lambda i, c: (c, i)),
                pl.BlockSpec((NT, NT), lambda i, c: (0, 0)),
                pl.BlockSpec((NT, 1), lambda i, c: (0, 0)),
                pl.BlockSpec((NT, 1), lambda i, c: (0, 0)),
            ],
            out_specs=pl.BlockSpec((1, TB), lambda i, c: (0, i)),
            scratch_shapes=[
                pltpu.VMEM((NT, TB), jnp.float32),   # alpha carry
                pltpu.VMEM((NT, TB), jnp.float32),   # one-hot(tags[t-1]) carry
                pltpu.VMEM((NT, TB), jnp.float32),   # one-hot(last valid tag) carry
                pltpu.VMEM((1, TB), jnp.float32),    # numerator partial sum
            ],
        ),
        compiler_params=pltpu.CompilerParams(
            dimension_semantics=("parallel", "arbitrary"),
            # Raise the scoped-VMEM cap (16 MiB default on v5e, 32 MiB on v6e/v7x);
            # 64 MiB is v7x's physical ceiling, tile chooser budgets ~48 MiB.
            vmem_limit_bytes=64 * 1024 * 1024,
        ),
    )(logits_t, tags_t, mask_t, trans_t, start_col, end_col)

    # Matmul operands kept f32 (bf16 MXU cast rejected: ~4e-3/step error risk).
    return jnp.sum(out)   # glue: torch.sum(numerator - denominator)


# ------------------------- pure-JAX reference ----------------------------
def _crf_ref(logits, tags, mask, trans, start, end):
    B, T, NT = logits.shape
    mask_f = mask.astype(jnp.float32)
    b_idx = jnp.arange(B)
    score = start[tags[:, 0]]
    for t in range(T - 1):
        cur, nxt = tags[:, t], tags[:, t + 1]
        score = score + trans[cur, nxt] * mask_f[:, t + 1] + logits[b_idx, t, cur] * mask_f[:, t]
    last_idx = mask_f.sum(1).astype(jnp.int32) - 1
    last_tags = tags[b_idx, last_idx]
    score = score + end[last_tags] + logits[b_idx, T - 1, last_tags] * mask_f[:, T - 1]

    alpha = start[None, :] + logits[:, 0]
    for t in range(1, T):
        s = alpha[:, :, None] + trans[None] + logits[:, t][:, None, :]
        new = jax.scipy.special.logsumexp(s, axis=1)
        mt = mask_f[:, t][:, None]
        alpha = new * mt + alpha * (1.0 - mt)
    denom = jax.scipy.special.logsumexp(alpha + end[None, :], axis=-1)
    return jnp.sum(score - denom)


if __name__ == "__main__":
    key = jax.random.PRNGKey(0)

    # ------------- test 1: toy shape, single batch / time block -------------
    B, T, NT = 2, 8, 8
    k_logits, k_tags, k_trans, k_start, k_end, k2 = jax.random.split(key, 6)

    xavier_std = (2.0 / (NT + NT)) ** 0.5  # mirrors reset_parameters (xavier_normal_)
    transitions = jax.random.normal(k_trans, (NT, NT), jnp.float32) * xavier_std
    start_transitions = jax.random.normal(k_start, (NT,), jnp.float32)
    end_transitions = jax.random.normal(k_end, (NT,), jnp.float32)

    logits = jax.random.normal(k_logits, (B, T, NT), jnp.float32)
    tags = jax.random.randint(k_tags, (B, T), 0, NT, jnp.int32)
    mask = jnp.array([[True] * T, [True] * (T - 2) + [False] * 2], dtype=jnp.bool_)

    out = crf_log_likelihood(logits, tags, mask, transitions, start_transitions, end_transitions)
    out = jax.block_until_ready(out)
    ref = _crf_ref(logits, tags, mask, transitions, start_transitions, end_transitions)
    assert jnp.allclose(out, ref, atol=1e-3, rtol=1e-3), (out, ref)

    # ---- test 2: gridded path (2 batch tiles x 2 T-chunks), odd num_tags ----
    B2, T2, NT2 = 256, 16, 13
    ka, kb, kc, kd, ke, kf = jax.random.split(k2, 6)
    xavier_std2 = (2.0 / (NT2 + NT2)) ** 0.5
    trans_2 = jax.random.normal(kc, (NT2, NT2), jnp.float32) * xavier_std2
    start_2 = jax.random.normal(kd, (NT2,), jnp.float32)
    end_2 = jax.random.normal(ke, (NT2,), jnp.float32)
    logits_2 = jax.random.normal(ka, (B2, T2, NT2), jnp.float32)
    tags_2 = jax.random.randint(kb, (B2, T2), 0, NT2, jnp.int32)
    lengths = 1 + jax.random.randint(kf, (B2,), 0, T2)   # prefix masks, lengths in [1, T2]
    mask_2 = jnp.arange(T2)[None, :] < lengths[:, None]

    out2 = crf_log_likelihood(logits_2, tags_2, mask_2, trans_2, start_2, end_2,
                              batch_tile=128, t_chunk=8)
    out2 = jax.block_until_ready(out2)
    ref2 = _crf_ref(logits_2, tags_2, mask_2, trans_2, start_2, end_2)
    assert jnp.allclose(out2, ref2, atol=1e-3, rtol=1e-3), (out2, ref2)

    # TODO(synk): viterbi_tags (constrained top-k Viterbi decoding) is host-side
    # per-example Python with variable-length sequences; not ported to Pallas.
    print("KERNEL_OK")
</pallas_src>

<mosaic_0001>
module attributes {stable_mosaic.version = 11 : i64} {
  func.func @_crf_kernel(%arg0: i32, %arg1: i32, %arg2: memref<8x8x2xf32, #tpu.memory_space<vmem>>, %arg3: memref<8x2xi32, #tpu.memory_space<vmem>>, %arg4: memref<8x2xf32, #tpu.memory_space<vmem>>, %arg5: memref<8x8xf32, #tpu.memory_space<vmem>>, %arg6: memref<8x1xf32, #tpu.memory_space<vmem>>, %arg7: memref<8x1xf32, #tpu.memory_space<vmem>>, %arg8: memref<1x2xf32, #tpu.memory_space<vmem>>, %arg9: memref<8x2xf32, #tpu.memory_space<vmem>>, %arg10: memref<8x2xf32, #tpu.memory_space<vmem>>, %arg11: memref<8x2xf32, #tpu.memory_space<vmem>>, %arg12: memref<1x2xf32, #tpu.memory_space<vmem>>) attributes {dimension_semantics = [#tpu.dimension_semantics<parallel>, #tpu.dimension_semantics<arbitrary>], iteration_bounds = array<i64: 1, 1>, scalar_prefetch = 0 : i64, scratch_operands = 4 : i64, tpu.core_type = #tpu.core_type<tc>, window_params = [{transform_indices = @transform_0, window_bounds = array<i64: 8, 8, 2>}, {transform_indices = @transform_1, window_bounds = array<i64: 8, 2>}, {transform_indices = @transform_2, window_bounds = array<i64: 8, 2>}, {pipeline_mode = #tpu.pipeline_mode<synchronous>, transform_indices = @transform_3, window_bounds = array<i64: 8, 8>}, {pipeline_mode = #tpu.pipeline_mode<synchronous>, transform_indices = @transform_4, window_bounds = array<i64: 8, 1>}, {pipeline_mode = #tpu.pipeline_mode<synchronous>, transform_indices = @transform_5, window_bounds = array<i64: 8, 1>}, {transform_indices = @transform_6, window_bounds = array<i64: 1, 2>}]} {
    %c8_i32 = arith.constant 8 : i32
    %0 = arith.muli %arg1, %c8_i32 : i32
    %c0 = arith.constant 0 : index
    %c0_0 = arith.constant 0 : index
    %1 = vector.load %arg5[%c0, %c0_0] : memref<8x8xf32, #tpu.memory_space<vmem>>, vector<8x8xf32>
    %c0_1 = arith.constant 0 : index
    %c0_2 = arith.constant 0 : index
    %2 = vector.load %arg6[%c0_1, %c0_2] : memref<8x1xf32, #tpu.memory_space<vmem>>, vector<8x1xf32>
    %c0_3 = arith.constant 0 : index
    %c0_4 = arith.constant 0 : index
    %3 = vector.load %arg7[%c0_3, %c0_4] : memref<8x1xf32, #tpu.memory_space<vmem>>, vector<8x1xf32>
    %cst = arith.constant dense<0xFF800000> : vector<8xf32>
    %4 = vector.multi_reduction <maximumf>, %1, %cst [1] : vector<8x8xf32> to vector<8xf32>
    %5 = vector.shape_cast %4 : vector<8xf32> to vector<8x1xf32>
    %6 = vector.broadcast %5 : vector<8x1xf32> to vector<8x8xf32>
    %7 = arith.subf %1, %6 : vector<8x8xf32>
    %8 = math.exp %7 : vector<8x8xf32>
    %9 = tpu.iota {dimensions = array<i32: 0>} : vector<8x2xi32>
    %c0_i32 = arith.constant 0 : i32
    %10 = arith.cmpi eq, %arg1, %c0_i32 : i32
    %11 = arith.extui %10 : i1 to i32
    %c0_i32_5 = arith.constant 0 : i32
    %12 = arith.cmpi ne, %11, %c0_i32_5 : i32
    scf.if %12 {
      %c0_138 = arith.constant 0 : index
      %c0_139 = arith.constant 0 : index
      %424 = vector.load %arg3[%c0_138, %c0_139] : memref<8x2xi32, #tpu.memory_space<vmem>>, vector<1x2xi32>
      %425 = vector.broadcast %424 : vector<1x2xi32> to vector<8x2xi32>
      %426 = arith.cmpi eq, %9, %425 : vector<8x2xi32>
      %427 = arith.extui %426 : vector<8x2xi1> to vector<8x2xi32>
      %428 = arith.sitofp %427 : vector<8x2xi32> to vector<8x2xf32>
      %c0_140 = arith.constant 0 : index
      %c0_141 = arith.constant 0 : index
      %c0_142 = arith.constant 0 : index
      %429 = vector.load %arg2[%c0_140, %c0_141, %c0_142] : memref<8x8x2xf32, #tpu.memory_space<vmem>>, vector<1x8x2xf32>
      %430 = vector.shape_cast %429 : vector<1x8x2xf32> to vector<8x2xf32>
      %431 = vector.broadcast %2 : vector<8x1xf32> to vector<8x2xf32>
      %432 = arith.addf %431, %430 : vector<8x2xf32>
      %c0_143 = arith.constant 0 : index
      %c0_144 = arith.constant 0 : index
      %433 = vector.load %arg9[%c0_143, %c0_144] : memref<8x2xf32, #tpu.memory_space<vmem>>, vector<8x2xf32>
      tpu.vector_store %arg9[%c0_143, %c0_144], %432 {strides = array<i32>} : memref<8x2xf32, #tpu.memory_space<vmem>>, vector<8x2xf32>,
      %c0_145 = arith.constant 0 : index
      %c0_146 = arith.constant 0 : index
      %434 = vector.load %arg10[%c0_145, %c0_146] : memref<8x2xf32, #tpu.memory_space<vmem>>, vector<8x2xf32>
      tpu.vector_store %arg10[%c0_145, %c0_146], %428 {strides = array<i32>} : memref<8x2xf32, #tpu.memory_space<vmem>>, vector<8x2xf32>,
      %cst_147 = arith.constant 0.000000e+00 : f32
      %435 = vector.broadcast %cst_147 : f32 to vector<8x2xf32>
      %c0_148 = arith.constant 0 : index
      %c0_149 = arith.constant 0 : index
      %436 = vector.load %arg11[%c0_148, %c0_149] : memref<8x2xf32, #tpu.memory_space<vmem>>, vector<8x2xf32>
      tpu.vector_store %arg11[%c0_148, %c0_149], %435 {strides = array<i32>} : memref<8x2xf32, #tpu.memory_space<vmem>>, vector<8x2xf32>,
      %437 = vector.broadcast %2 : vector<8x1xf32> to vector<8x2xf32>
      %438 = arith.mulf %437, %428 : vector<8x2xf32>
      %cst_150 = arith.constant dense<0.000000e+00> : vector<2xf32>
      %439 = vector.multi_reduction <add>, %438, %cst_150 [0] : vector<8x2xf32> to vector<2xf32>
      %440 = vector.shape_cast %439 : vector<2xf32> to vector<1x2xf32>
      %c0_151 = arith.constant 0 : index
      %c0_152 = arith.constant 0 : index
      %441 = vector.load %arg12[%c0_151, %c0_152] : memref<1x2xf32, #tpu.memory_space<vmem>>, vector<1x2xf32>
      tpu.vector_store %arg12[%c0_151, %c0_152], %440 {strides = array<i32>} : memref<1x2xf32, #tpu.memory_space<vmem>>, vector<1x2xf32>,
    } else {
    }
    %c0_6 = arith.constant 0 : index
    %c0_7 = arith.constant 0 : index
    %13 = vector.load %arg9[%c0_6, %c0_7] : memref<8x2xf32, #tpu.memory_space<vmem>>, vector<8x2xf32>
    %c0_8 = arith.constant 0 : index
    %c0_9 = arith.constant 0 : index
    %14 = vector.load %arg10[%c0_8, %c0_9] : memref<8x2xf32, #tpu.memory_space<vmem>>, vector<8x2xf32>
    %c0_10 = arith.constant 0 : index
    %c0_11 = arith.constant 0 : index
    %15 = vector.load %arg11[%c0_10, %c0_11] : memref<8x2xf32, #tpu.memory_space<vmem>>, vector<8x2xf32>
    %c0_12 = arith.constant 0 : index
    %c0_13 = arith.constant 0 : index
    %16 = vector.load %arg12[%c0_12, %c0_13] : memref<1x2xf32, #tpu.memory_space<vmem>>, vector<1x2xf32>
    %c0_i32_14 = arith.constant 0 : i32
    %17 = arith.addi %0, %c0_i32_14 : i32
    %c0_i32_15 = arith.constant 0 : i32
    %18 = arith.cmpi eq, %17, %c0_i32_15 : i32
    %19 = arith.index_cast %c0_i32_14 : i32 to index
    %c0_16 = arith.constant 0 : index
    %c0_17 = arith.constant 0 : index
    %20 = vector.load %arg2[%19, %c0_16, %c0_17] : memref<8x8x2xf32, #tpu.memory_space<vmem>>, vector<1x8x2xf32>
    %21 = vector.shape_cast %20 : vector<1x8x2xf32> to vector<8x2xf32>
    %22 = arith.index_cast %c0_i32_14 : i32 to index
    %c0_18 = arith.constant 0 : index
    %23 = vector.load %arg3[%22, %c0_18] : memref<8x2xi32, #tpu.memory_space<vmem>>, vector<1x2xi32>
    %24 = arith.index_cast %c0_i32_14 : i32 to index
    %c0_19 = arith.constant 0 : index
    %25 = vector.load %arg4[%24, %c0_19] : memref<8x2xf32, #tpu.memory_space<vmem>>, vector<1x2xf32>
    %26 = vector.broadcast %23 : vector<1x2xi32> to vector<8x2xi32>
    %27 = arith.cmpi eq, %9, %26 : vector<8x2xi32>
    %28 = arith.extui %27 : vector<8x2xi1> to vector<8x2xi32>
    %29 = arith.sitofp %28 : vector<8x2xi32> to vector<8x2xf32>
    %30 = arith.mulf %21, %29 : vector<8x2xf32>
    %cst_20 = arith.constant dense<0.000000e+00> : vector<2xf32>
    %31 = vector.multi_reduction <add>, %30, %cst_20 [0] : vector<8x2xf32> to vector<2xf32>
    %32 = vector.shape_cast %31 : vector<2xf32> to vector<1x2xf32>
    %cst_21 = arith.constant dense<0.000000e+00> : vector<8x2xf32>
    %33 = tpu.matmul %1, %14, %cst_21 {dimension_numbers = #tpu.dot_dimension_numbers<[1], [0], [0], [1], [0, 0, 1, 1], [], []>} : vector<8x8xf32>, vector<8x2xf32>, vector<8x2xf32> -> vector<8x2xf32>
    %34 = arith.mulf %33, %29 : vector<8x2xf32>
    %cst_22 = arith.constant dense<0.000000e+00> : vector<2xf32>
    %35 = vector.multi_reduction <add>, %34, %cst_22 [0] : vector<8x2xf32> to vector<2xf32>
    %36 = vector.shape_cast %35 : vector<2xf32> to vector<1x2xf32>
    %cst_23 = arith.constant 0.000000e+00 : f32
    %37 = vector.broadcast %cst_23 : f32 to vector<1x2xf32>
    %38 = arith.select %18, %37, %36 : vector<1x2xf32>
    %39 = arith.addf %32, %38 : vector<1x2xf32>
    %40 = arith.mulf %39, %25 : vector<1x2xf32>
    %41 = arith.addf %16, %40 : vector<1x2xf32>
    %cst_24 = arith.constant dense<0xFF800000> : vector<2xf32>
    %42 = vector.multi_reduction <maximumf>, %13, %cst_24 [0] : vector<8x2xf32> to vector<2xf32>
    %43 = vector.shape_cast %42 : vector<2xf32> to vector<1x2xf32>
    %44 = vector.broadcast %43 : vector<1x2xf32> to vector<8x2xf32>
    %45 = arith.subf %13, %44 : vector<8x2xf32>
    %46 = math.exp %45 : vector<8x2xf32>
    %cst_25 = arith.constant dense<0.000000e+00> : vector<8x2xf32>
    %47 = tpu.matmul %8, %46, %cst_25 {dimension_numbers = #tpu.dot_dimension_numbers<[1], [0], [0], [1], [0, 0, 1, 1], [], []>} : vector<8x8xf32>, vector<8x2xf32>, vector<8x2xf32> -> vector<8x2xf32>
    %48 = vector.broadcast %43 : vector<1x2xf32> to vector<8x2xf32>
    %49 = arith.addf %21, %48 : vector<8x2xf32>
    %50 = vector.broadcast %5 : vector<8x1xf32> to vector<8x2xf32>
    %51 = arith.addf %49, %50 : vector<8x2xf32>
    %cst_26 = arith.constant 1.000000e-30 : f32
    %52 = vector.broadcast %cst_26 : f32 to vector<8x2xf32>
    %53 = arith.maximumf %47, %52 : vector<8x2xf32>
    %54 = math.log %53 : vector<8x2xf32>
    %55 = arith.addf %51, %54 : vector<8x2xf32>
    %cst_27 = arith.constant 0.000000e+00 : f32
    %56 = vector.broadcast %cst_27 : f32 to vector<1x2xf32>
    %57 = arith.cmpf one, %25, %56 : vector<1x2xf32>
    %58 = vector.shape_cast %57 : vector<1x2xi1> to vector<1x2xi1>
    %59 = vector.broadcast %58 : vector<1x2xi1> to vector<8x2xi1>
    %60 = arith.select %59, %55, %13 : vector<8x2xi1>, vector<8x2xf32>
    %61 = arith.select %18, %13, %60 : vector<8x2xf32>
    %cst_28 = arith.constant 0.000000e+00 : f32
    %62 = vector.broadcast %cst_28 : f32 to vector<1x2xf32>
    %63 = arith.cmpf one, %25, %62 : vector<1x2xf32>
    %64 = vector.shape_cast %63 : vector<1x2xi1> to vector<1x2xi1>
    %65 = vector.broadcast %64 : vector<1x2xi1> to vector<8x2xi1>
    %66 = arith.select %65, %29, %15 : vector<8x2xi1>, vector<8x2xf32>
    %c1_i32 = arith.constant 1 : i32
    %67 = arith.addi %0, %c1_i32 : i32
    %c0_i32_29 = arith.constant 0 : i32
    %68 = arith.cmpi eq, %67, %c0_i32_29 : i32
    %69 = arith.index_cast %c1_i32 : i32 to index
    %c0_30 = arith.constant 0 : index
    %c0_31 = arith.constant 0 : index
    %70 = vector.load %arg2[%69, %c0_30, %c0_31] : memref<8x8x2xf32, #tpu.memory_space<vmem>>, vector<1x8x2xf32>
    %71 = vector.shape_cast %70 : vector<1x8x2xf32> to vector<8x2xf32>
    %72 = arith.index_cast %c1_i32 : i32 to index
    %c0_32 = arith.constant 0 : index
    %73 = vector.load %arg3[%72, %c0_32] : memref<8x2xi32, #tpu.memory_space<vmem>>, vector<1x2xi32>
    %74 = arith.index_cast %c1_i32 : i32 to index
    %c0_33 = arith.constant 0 : index
    %75 = vector.load %arg4[%74, %c0_33] : memref<8x2xf32, #tpu.memory_space<vmem>>, vector<1x2xf32>
    %76 = vector.broadcast %73 : vector<1x2xi32> to vector<8x2xi32>
    %77 = arith.cmpi eq, %9, %76 : vector<8x2xi32>
    %78 = arith.extui %77 : vector<8x2xi1> to vector<8x2xi32>
    %79 = arith.sitofp %78 : vector<8x2xi32> to vector<8x2xf32>
    %80 = arith.mulf %71, %79 : vector<8x2xf32>
    %cst_34 = arith.constant dense<0.000000e+00> : vector<2xf32>
    %81 = vector.multi_reduction <add>, %80, %cst_34 [0] : vector<8x2xf32> to vector<2xf32>
    %82 = vector.shape_cast %81 : vector<2xf32> to vector<1x2xf32>
    %cst_35 = arith.constant dense<0.000000e+00> : vector<8x2xf32>
    %83 = tpu.matmul %1, %29, %cst_35 {dimension_numbers = #tpu.dot_dimension_numbers<[1], [0], [0], [1], [0, 0, 1, 1], [], []>} : vector<8x8xf32>, vector<8x2xf32>, vector<8x2xf32> -> vector<8x2xf32>
    %84 = arith.mulf %83, %79 : vector<8x2xf32>
    %cst_36 = arith.constant dense<0.000000e+00> : vector<2xf32>
    %85 = vector.multi_reduction <add>, %84, %cst_36 [0] : vector<8x2xf32> to vector<2xf32>
    %86 = vector.shape_cast %85 : vector<2xf32> to vector<1x2xf32>
    %cst_37 = arith.constant 0.000000e+00 : f32
    %87 = vector.broadcast %cst_37 : f32 to vector<1x2xf32>
    %88 = arith.select %68, %87, %86 : vector<1x2xf32>
    %89 = arith.addf %82, %88 : vector<1x2xf32>
    %90 = arith.mulf %89, %75 : vector<1x2xf32>
    %91 = arith.addf %41, %90 : vector<1x2xf32>
    %cst_38 = arith.constant dense<0xFF800000> : vector<2xf32>
    %92 = vector.multi_reduction <maximumf>, %61, %cst_38 [0] : vector<8x2xf32> to vector<2xf32>
    %93 = vector.shape_cast %92 : vector<2xf32> to vector<1x2xf32>
    %94 = vector.broadcast %93 : vector<1x2xf32> to vector<8x2xf32>
    %95 = arith.subf %61, %94 : vector<8x2xf32>
    %96 = math.exp %95 : vector<8x2xf32>
    %cst_39 = arith.constant dense<0.000000e+00> : vector<8x2xf32>
    %97 = tpu.matmul %8, %96, %cst_39 {dimension_numbers = #tpu.dot_dimension_numbers<[1], [0], [0], [1], [0, 0, 1, 1], [], []>} : vector<8x8xf32>, vector<8x2xf32>, vector<8x2xf32> -> vector<8x2xf32>
    %98 = vector.broadcast %93 : vector<1x2xf32> to vector<8x2xf32>
    %99 = arith.addf %71, %98 : vector<8x2xf32>
    %100 = vector.broadcast %5 : vector<8x1xf32> to vector<8x2xf32>
    %101 = arith.addf %99, %100 : vector<8x2xf32>
    %cst_40 = arith.constant 1.000000e-30 : f32
    %102 = vector.broadcast %cst_40 : f32 to vector<8x2xf32>
    %103 = arith.maximumf %97, %102 : vector<8x2xf32>
    %104 = math.log %103 : vector<8x2xf32>
    %105 = arith.addf %101, %104 : vector<8x2xf32>
    %cst_41 = arith.constant 0.000000e+00 : f32
    %106 = vector.broadcast %cst_41 : f32 to vector<1x2xf32>
    %107 = arith.cmpf one, %75, %106 : vector<1x2xf32>
    %108 = vector.shape_cast %107 : vector<1x2xi1> to vector<1x2xi1>
    %109 = vector.broadcast %108 : vector<1x2xi1> to vector<8x2xi1>
    %110 = arith.select %109, %105, %61 : vector<8x2xi1>, vector<8x2xf32>
    %111 = arith.select %68, %61, %110 : vector<8x2xf32>
    %cst_42 = arith.constant 0.000000e+00 : f32
    %112 = vector.broadcast %cst_42 : f32 to vector<1x2xf32>
    %113 = arith.cmpf one, %75, %112 : vector<1x2xf32>
    %114 = vector.shape_cast %113 : vector<1x2xi1> to vector<1x2xi1>
    %115 = vector.broadcast %114 : vector<1x2xi1> to vector<8x2xi1>
    %116 = arith.select %115, %79, %66 : vector<8x2xi1>, vector<8x2xf32>
    %c2_i32 = arith.constant 2 : i32
    %117 = arith.addi %0, %c2_i32 : i32
    %c0_i32_43 = arith.constant 0 : i32
    %118 = arith.cmpi eq, %117, %c0_i32_43 : i32
    %119 = arith.index_cast %c2_i32 : i32 to index
    %c0_44 = arith.constant 0 : index
    %c0_45 = arith.constant 0 : index
    %120 = vector.load %arg2[%119, %c0_44, %c0_45] : memref<8x8x2xf32, #tpu.memory_space<vmem>>, vector<1x8x2xf32>
    %121 = vector.shape_cast %120 : vector<1x8x2xf32> to vector<8x2xf32>
    %122 = arith.index_cast %c2_i32 : i32 to index
    %c0_46 = arith.constant 0 : index
    %123 = vector.load %arg3[%122, %c0_46] : memref<8x2xi32, #tpu.memory_space<vmem>>, vector<1x2xi32>
    %124 = arith.index_cast %c2_i32 : i32 to index
    %c0_47 = arith.constant 0 : index
    %125 = vector.load %arg4[%124, %c0_47] : memref<8x2xf32, #tpu.memory_space<vmem>>, vector<1x2xf32>
    %126 = vector.broadcast %123 : vector<1x2xi32> to vector<8x2xi32>
    %127 = arith.cmpi eq, %9, %126 : vector<8x2xi32>
    %128 = arith.extui %127 : vector<8x2xi1> to vector<8x2xi32>
    %129 = arith.sitofp %128 : vector<8x2xi32> to vector<8x2xf32>
    %130 = arith.mulf %121, %129 : vector<8x2xf32>
    %cst_48 = arith.constant dense<0.000000e+00> : vector<2xf32>
    %131 = vector.multi_reduction <add>, %130, %cst_48 [0] : vector<8x2xf32> to vector<2xf32>
    %132 = vector.shape_cast %131 : vector<2xf32> to vector<1x2xf32>
    %cst_49 = arith.constant dense<0.000000e+00> : vector<8x2xf32>
    %133 = tpu.matmul %1, %79, %cst_49 {dimension_numbers = #tpu.dot_dimension_numbers<[1], [0], [0], [1], [0, 0, 1, 1], [], []>} : vector<8x8xf32>, vector<8x2xf32>, vector<8x2xf32> -> vector<8x2xf32>
    %134 = arith.mulf %133, %129 : vector<8x2xf32>
    %cst_50 = arith.constant dense<0.000000e+00> : vector<2xf32>
    %135 = vector.multi_reduction <add>, %134, %cst_50 [0] : vector<8x2xf32> to vector<2xf32>
    %136 = vector.shape_cast %135 : vector<2xf32> to vector<1x2xf32>
    %cst_51 = arith.constant 0.000000e+00 : f32
    %137 = vector.broadcast %cst_51 : f32 to vector<1x2xf32>
    %138 = arith.select %118, %137, %136 : vector<1x2xf32>
    %139 = arith.addf %132, %138 : vector<1x2xf32>
    %140 = arith.mulf %139, %125 : vector<1x2xf32>
    %141 = arith.addf %91, %140 : vector<1x2xf32>
    %cst_52 = arith.constant dense<0xFF800000> : vector<2xf32>
    %142 = vector.multi_reduction <maximumf>, %111, %cst_52 [0] : vector<8x2xf32> to vector<2xf32>
    %143 = vector.shape_cast %142 : vector<2xf32> to vector<1x2xf32>
    %144 = vector.broadcast %143 : vector<1x2xf32> to vector<8x2xf32>
    %145 = arith.subf %111, %144 : vector<8x2xf32>
    %146 = math.exp %145 : vector<8x2xf32>
    %cst_53 = arith.constant dense<0.000000e+00> : vector<8x2xf32>
    %147 = tpu.matmul %8, %146, %cst_53 {dimension_numbers = #tpu.dot_dimension_numbers<[1], [0], [0], [1], [0, 0, 1, 1], [], []>} : vector<8x8xf32>, vector<8x2xf32>, vector<8x2xf32> -> vector<8x2xf32>
    %148 = vector.broadcast %143 : vector<1x2xf32> to vector<8x2xf32>
    %149 = arith.addf %121, %148 : vector<8x2xf32>
    %150 = vector.broadcast %5 : vector<8x1xf32> to vector<8x2xf32>
    %151 = arith.addf %149, %150 : vector<8x2xf32>
    %cst_54 = arith.constant 1.000000e-30 : f32
    %152 = vector.broadcast %cst_54 : f32 to vector<8x2xf32>
    %153 = arith.maximumf %147, %152 : vector<8x2xf32>
    %154 = math.log %153 : vector<8x2xf32>
    %155 = arith.addf %151, %154 : vector<8x2xf32>
    %cst_55 = arith.constant 0.000000e+00 : f32
    %156 = vector.broadcast %cst_55 : f32 to vector<1x2xf32>
    %157 = arith.cmpf one, %125, %156 : vector<1x2xf32>
    %158 = vector.shape_cast %157 : vector<1x2xi1> to vector<1x2xi1>
    %159 = vector.broadcast %158 : vector<1x2xi1> to vector<8x2xi1>
    %160 = arith.select %159, %155, %111 : vector<8x2xi1>, vector<8x2xf32>
    %161 = arith.select %118, %111, %160 : vector<8x2xf32>
    %cst_56 = arith.constant 0.000000e+00 : f32
    %162 = vector.broadcast %cst_56 : f32 to vector<1x2xf32>
    %163 = arith.cmpf one, %125, %162 : vector<1x2xf32>
    %164 = vector.shape_cast %163 : vector<1x2xi1> to vector<1x2xi1>
    %165 = vector.broadcast %164 : vector<1x2xi1> to vector<8x2xi1>
    %166 = arith.select %165, %129, %116 : vector<8x2xi1>, vector<8x2xf32>
    %c3_i32 = arith.constant 3 : i32
    %167 = arith.addi %0, %c3_i32 : i32
    %c0_i32_57 = arith.constant 0 : i32
    %168 = arith.cmpi eq, %167, %c0_i32_57 : i32
    %169 = arith.index_cast %c3_i32 : i32 to index
    %c0_58 = arith.constant 0 : index
    %c0_59 = arith.constant 0 : index
    %170 = vector.load %arg2[%169, %c0_58, %c0_59] : memref<8x8x2xf32, #tpu.memory_space<vmem>>, vector<1x8x2xf32>
    %171 = vector.shape_cast %170 : vector<1x8x2xf32> to vector<8x2xf32>
    %172 = arith.index_cast %c3_i32 : i32 to index
    %c0_60 = arith.constant 0 : index
    %173 = vector.load %arg3[%172, %c0_60] : memref<8x2xi32, #tpu.memory_space<vmem>>, vector<1x2xi32>
    %174 = arith.index_cast %c3_i32 : i32 to index
    %c0_61 = arith.constant 0 : index
    %175 = vector.load %arg4[%174, %c0_61] : memref<8x2xf32, #tpu.memory_space<vmem>>, vector<1x2xf32>
    %176 = vector.broadcast %173 : vector<1x2xi32> to vector<8x2xi32>
    %177 = arith.cmpi eq, %9, %176 : vector<8x2xi32>
    %178 = arith.extui %177 : vector<8x2xi1> to vector<8x2xi32>
    %179 = arith.sitofp %178 : vector<8x2xi32> to vector<8x2xf32>
    %180 = arith.mulf %171, %179 : vector<8x2xf32>
    %cst_62 = arith.constant dense<0.000000e+00> : vector<2xf32>
    %181 = vector.multi_reduction <add>, %180, %cst_62 [0] : vector<8x2xf32> to vector<2xf32>
    %182 = vector.shape_cast %181 : vector<2xf32> to vector<1x2xf32>
    %cst_63 = arith.constant dense<0.000000e+00> : vector<8x2xf32>
    %183 = tpu.matmul %1, %129, %cst_63 {dimension_numbers = #tpu.dot_dimension_numbers<[1], [0], [0], [1], [0, 0, 1, 1], [], []>} : vector<8x8xf32>, vector<8x2xf32>, vector<8x2xf32> -> vector<8x2xf32>
    %184 = arith.mulf %183, %179 : vector<8x2xf32>
    %cst_64 = arith.constant dense<0.000000e+00> : vector<2xf32>
    %185 = vector.multi_reduction <add>, %184, %cst_64 [0] : vector<8x2xf32> to vector<2xf32>
    %186 = vector.shape_cast %185 : vector<2xf32> to vector<1x2xf32>
    %cst_65 = arith.constant 0.000000e+00 : f32
    %187 = vector.broadcast %cst_65 : f32 to vector<1x2xf32>
    %188 = arith.select %168, %187, %186 : vector<1x2xf32>
    %189 = arith.addf %182, %188 : vector<1x2xf32>
    %190 = arith.mulf %189, %175 : vector<1x2xf32>
    %191 = arith.addf %141, %190 : vector<1x2xf32>
    %cst_66 = arith.constant dense<0xFF800000> : vector<2xf32>
    %192 = vector.multi_reduction <maximumf>, %161, %cst_66 [0] : vector<8x2xf32> to vector<2xf32>
    %193 = vector.shape_cast %192 : vector<2xf32> to vector<1x2xf32>
    %194 = vector.broadcast %193 : vector<1x2xf32> to vector<8x2xf32>
    %195 = arith.subf %161, %194 : vector<8x2xf32>
    %196 = math.exp %195 : vector<8x2xf32>
    %cst_67 = arith.constant dense<0.000000e+00> : vector<8x2xf32>
    %197 = tpu.matmul %8, %196, %cst_67 {dimension_numbers = #tpu.dot_dimension_numbers<[1], [0], [0], [1], [0, 0, 1, 1], [], []>} : vector<8x8xf32>, vector<8x2xf32>, vector<8x2xf32> -> vector<8x2xf32>
    %198 = vector.broadcast %193 : vector<1x2xf32> to vector<8x2xf32>
    %199 = arith.addf %171, %198 : vector<8x2xf32>
    %200 = vector.broadcast %5 : vector<8x1xf32> to vector<8x2xf32>
    %201 = arith.addf %199, %200 : vector<8x2xf32>
    %cst_68 = arith.constant 1.000000e-30 : f32
    %202 = vector.broadcast %cst_68 : f32 to vector<8x2xf32>
    %203 = arith.maximumf %197, %202 : vector<8x2xf32>
    %204 = math.log %203 : vector<8x2xf32>
    %205 = arith.addf %201, %204 : vector<8x2xf32>
    %cst_69 = arith.constant 0.000000e+00 : f32
    %206 = vector.broadcast %cst_69 : f32 to vector<1x2xf32>
    %207 = arith.cmpf one, %175, %206 : vector<1x2xf32>
    %208 = vector.shape_cast %207 : vector<1x2xi1> to vector<1x2xi1>
    %209 = vector.broadcast %208 : vector<1x2xi1> to vector<8x2xi1>
    %210 = arith.select %209, %205, %161 : vector<8x2xi1>, vector<8x2xf32>
    %211 = arith.select %168, %161, %210 : vector<8x2xf32>
    %cst_70 = arith.constant 0.000000e+00 : f32
    %212 = vector.broadcast %cst_70 : f32 to vector<1x2xf32>
    %213 = arith.cmpf one, %175, %212 : vector<1x2xf32>
    %214 = vector.shape_cast %213 : vector<1x2xi1> to vector<1x2xi1>
    %215 = vector.broadcast %214 : vector<1x2xi1> to vector<8x2xi1>
    %216 = arith.select %215, %179, %166 : vector<8x2xi1>, vector<8x2xf32>
    %c4_i32 = arith.constant 4 : i32
    %217 = arith.addi %0, %c4_i32 : i32
    %c0_i32_71 = arith.constant 0 : i32
    %218 = arith.cmpi eq, %217, %c0_i32_71 : i32
    %219 = arith.index_cast %c4_i32 : i32 to index
    %c0_72 = arith.constant 0 : index
    %c0_73 = arith.constant 0 : index
    %220 = vector.load %arg2[%219, %c0_72, %c0_73] : memref<8x8x2xf32, #tpu.memory_space<vmem>>, vector<1x8x2xf32>
    %221 = vector.shape_cast %220 : vector<1x8x2xf32> to vector<8x2xf32>
    %222 = arith.index_cast %c4_i32 : i32 to index
    %c0_74 = arith.constant 0 : index
    %223 = vector.load %arg3[%222, %c0_74] : memref<8x2xi32, #tpu.memory_space<vmem>>, vector<1x2xi32>
    %224 = arith.index_cast %c4_i32 : i32 to index
    %c0_75 = arith.constant 0 : index
    %225 = vector.load %arg4[%224, %c0_75] : memref<8x2xf32, #tpu.memory_space<vmem>>, vector<1x2xf32>
    %226 = vector.broadcast %223 : vector<1x2xi32> to vector<8x2xi32>
    %227 = arith.cmpi eq, %9, %226 : vector<8x2xi32>
    %228 = arith.extui %227 : vector<8x2xi1> to vector<8x2xi32>
    %229 = arith.sitofp %228 : vector<8x2xi32> to vector<8x2xf32>
    %230 = arith.mulf %221, %229 : vector<8x2xf32>
    %cst_76 = arith.constant dense<0.000000e+00> : vector<2xf32>
    %231 = vector.multi_reduction <add>, %230, %cst_76 [0] : vector<8x2xf32> to vector<2xf32>
    %232 = vector.shape_cast %231 : vector<2xf32> to vector<1x2xf32>
    %cst_77 = arith.constant dense<0.000000e+00> : vector<8x2xf32>
    %233 = tpu.matmul %1, %179, %cst_77 {dimension_numbers = #tpu.dot_dimension_numbers<[1], [0], [0], [1], [0, 0, 1, 1], [], []>} : vector<8x8xf32>, vector<8x2xf32>, vector<8x2xf32> -> vector<8x2xf32>
    %234 = arith.mulf %233, %229 : vector<8x2xf32>
    %cst_78 = arith.constant dense<0.000000e+00> : vector<2xf32>
    %235 = vector.multi_reduction <add>, %234, %cst_78 [0] : vector<8x2xf32> to vector<2xf32>
    %236 = vector.shape_cast %235 : vector<2xf32> to vector<1x2xf32>
    %cst_79 = arith.constant 0.000000e+00 : f32
    %237 = vector.broadcast %cst_79 : f32 to vector<1x2xf32>
    %238 = arith.select %218, %237, %236 : vector<1x2xf32>
    %239 = arith.addf %232, %238 : vector<1x2xf32>
    %240 = arith.mulf %239, %225 : vector<1x2xf32>
    %241 = arith.addf %191, %240 : vector<1x2xf32>
    %cst_80 = arith.constant dense<0xFF800000> : vector<2xf32>
    %242 = vector.multi_reduction <maximumf>, %211, %cst_80 [0] : vector<8x2xf32> to vector<2xf32>
    %243 = vector.shape_cast %242 : vector<2xf32> to vector<1x2xf32>
    %244 = vector.broadcast %243 : vector<1x2xf32> to vector<8x2xf32>
    %245 = arith.subf %211, %244 : vector<8x2xf32>
    %246 = math.exp %245 : vector<8x2xf32>
    %cst_81 = arith.constant dense<0.000000e+00> : vector<8x2xf32>
    %247 = tpu.matmul %8, %246, %cst_81 {dimension_numbers = #tpu.dot_dimension_numbers<[1], [0], [0], [1], [0, 0, 1, 1], [], []>} : vector<8x8xf32>, vector<8x2xf32>, vector<8x2xf32> -> vector<8x2xf32>
    %248 = vector.broadcast %243 : vector<1x2xf32> to vector<8x2xf32>
    %249 = arith.addf %221, %248 : vector<8x2xf32>
    %250 = vector.broadcast %5 : vector<8x1xf32> to vector<8x2xf32>
    %251 = arith.addf %249, %250 : vector<8x2xf32>
    %cst_82 = arith.constant 1.000000e-30 : f32
    %252 = vector.broadcast %cst_82 : f32 to vector<8x2xf32>
    %253 = arith.maximumf %247, %252 : vector<8x2xf32>
    %254 = math.log %253 : vector<8x2xf32>
    %255 = arith.addf %251, %254 : vector<8x2xf32>
    %cst_83 = arith.constant 0.000000e+00 : f32
    %256 = vector.broadcast %cst_83 : f32 to vector<1x2xf32>
    %257 = arith.cmpf one, %225, %256 : vector<1x2xf32>
    %258 = vector.shape_cast %257 : vector<1x2xi1> to vector<1x2xi1>
    %259 = vector.broadcast %258 : vector<1x2xi1> to vector<8x2xi1>
    %260 = arith.select %259, %255, %211 : vector<8x2xi1>, vector<8x2xf32>
    %261 = arith.select %218, %211, %260 : vector<8x2xf32>
    %cst_84 = arith.constant 0.000000e+00 : f32
    %262 = vector.broadcast %cst_84 : f32 to vector<1x2xf32>
    %263 = arith.cmpf one, %225, %262 : vector<1x2xf32>
    %264 = vector.shape_cast %263 : vector<1x2xi1> to vector<1x2xi1>
    %265 = vector.broadcast %264 : vector<1x2xi1> to vector<8x2xi1>
    %266 = arith.select %265, %229, %216 : vector<8x2xi1>, vector<8x2xf32>
    %c5_i32 = arith.constant 5 : i32
    %267 = arith.addi %0, %c5_i32 : i32
    %c0_i32_85 = arith.constant 0 : i32
    %268 = arith.cmpi eq, %267, %c0_i32_85 : i32
    %269 = arith.index_cast %c5_i32 : i32 to index
    %c0_86 = arith.constant 0 : index
    %c0_87 = arith.constant 0 : index
    %270 = vector.load %arg2[%269, %c0_86, %c0_87] : memref<8x8x2xf32, #tpu.memory_space<vmem>>, vector<1x8x2xf32>
    %271 = vector.shape_cast %270 : vector<1x8x2xf32> to vector<8x2xf32>
    %272 = arith.index_cast %c5_i32 : i32 to index
    %c0_88 = arith.constant 0 : index
    %273 = vector.load %arg3[%272, %c0_88] : memref<8x2xi32, #tpu.memory_space<vmem>>, vector<1x2xi32>
    %274 = arith.index_cast %c5_i32 : i32 to index
    %c0_89 = arith.constant 0 : index
    %275 = vector.load %arg4[%274, %c0_89] : memref<8x2xf32, #tpu.memory_space<vmem>>, vector<1x2xf32>
    %276 = vector.broadcast %273 : vector<1x2xi32> to vector<8x2xi32>
    %277 = arith.cmpi eq, %9, %276 : vector<8x2xi32>
    %278 = arith.extui %277 : vector<8x2xi1> to vector<8x2xi32>
    %279 = arith.sitofp %278 : vector<8x2xi32> to vector<8x2xf32>
    %280 = arith.mulf %271, %279 : vector<8x2xf32>
    %cst_90 = arith.constant dense<0.000000e+00> : vector<2xf32>
    %281 = vector.multi_reduction <add>, %280, %cst_90 [0] : vector<8x2xf32> to vector<2xf32>
    %282 = vector.shape_cast %281 : vector<2xf32> to vector<1x2xf32>
    %cst_91 = arith.constant dense<0.000000e+00> : vector<8x2xf32>
    %283 = tpu.matmul %1, %229, %cst_91 {dimension_numbers = #tpu.dot_dimension_numbers<[1], [0], [0], [1], [0, 0, 1, 1], [], []>} : vector<8x8xf32>, vector<8x2xf32>, vector<8x2xf32> -> vector<8x2xf32>
    %284 = arith.mulf %283, %279 : vector<8x2xf32>
    %cst_92 = arith.constant dense<0.000000e+00> : vector<2xf32>
    %285 = vector.multi_reduction <add>, %284, %cst_92 [0] : vector<8x2xf32> to vector<2xf32>
    %286 = vector.shape_cast %285 : vector<2xf32> to vector<1x2xf32>
    %cst_93 = arith.constant 0.000000e+00 : f32
    %287 = vector.broadcast %cst_93 : f32 to vector<1x2xf32>
    %288 = arith.select %268, %287, %286 : vector<1x2xf32>
    %289 = arith.addf %282, %288 : vector<1x2xf32>
    %290 = arith.mulf %289, %275 : vector<1x2xf32>
    %291 = arith.addf %241, %290 : vector<1x2xf32>
    %cst_94 = arith.constant dense<0xFF800000> : vector<2xf32>
    %292 = vector.multi_reduction <maximumf>, %261, %cst_94 [0] : vector<8x2xf32> to vector<2xf32>
    %293 = vector.shape_cast %292 : vector<2xf32> to vector<1x2xf32>
    %294 = vector.broadcast %293 : vector<1x2xf32> to vector<8x2xf32>
    %295 = arith.subf %261, %294 : vector<8x2xf32>
    %296 = math.exp %295 : vector<8x2xf32>
    %cst_95 = arith.constant dense<0.000000e+00> : vector<8x2xf32>
    %297 = tpu.matmul %8, %296, %cst_95 {dimension_numbers = #tpu.dot_dimension_numbers<[1], [0], [0], [1], [0, 0, 1, 1], [], []>} : vector<8x8xf32>, vector<8x2xf32>, vector<8x2xf32> -> vector<8x2xf32>
    %298 = vector.broadcast %293 : vector<1x2xf32> to vector<8x2xf32>
    %299 = arith.addf %271, %298 : vector<8x2xf32>
    %300 = vector.broadcast %5 : vector<8x1xf32> to vector<8x2xf32>
    %301 = arith.addf %299, %300 : vector<8x2xf32>
    %cst_96 = arith.constant 1.000000e-30 : f32
    %302 = vector.broadcast %cst_96 : f32 to vector<8x2xf32>
    %303 = arith.maximumf %297, %302 : vector<8x2xf32>
    %304 = math.log %303 : vector<8x2xf32>
    %305 = arith.addf %301, %304 : vector<8x2xf32>
    %cst_97 = arith.constant 0.000000e+00 : f32
    %306 = vector.broadcast %cst_97 : f32 to vector<1x2xf32>
    %307 = arith.cmpf one, %275, %306 : vector<1x2xf32>
    %308 = vector.shape_cast %307 : vector<1x2xi1> to vector<1x2xi1>
    %309 = vector.broadcast %308 : vector<1x2xi1> to vector<8x2xi1>
    %310 = arith.select %309, %305, %261 : vector<8x2xi1>, vector<8x2xf32>
    %311 = arith.select %268, %261, %310 : vector<8x2xf32>
    %cst_98 = arith.constant 0.000000e+00 : f32
    %312 = vector.broadcast %cst_98 : f32 to vector<1x2xf32>
    %313 = arith.cmpf one, %275, %312 : vector<1x2xf32>
    %314 = vector.shape_cast %313 : vector<1x2xi1> to vector<1x2xi1>
    %315 = vector.broadcast %314 : vector<1x2xi1> to vector<8x2xi1>
    %316 = arith.select %315, %279, %266 : vector<8x2xi1>, vector<8x2xf32>
    %c6_i32 = arith.constant 6 : i32
    %317 = arith.addi %0, %c6_i32 : i32
    %c0_i32_99 = arith.constant 0 : i32
    %318 = arith.cmpi eq, %317, %c0_i32_99 : i32
    %319 = arith.index_cast %c6_i32 : i32 to index
    %c0_100 = arith.constant 0 : index
    %c0_101 = arith.constant 0 : index
    %320 = vector.load %arg2[%319, %c0_100, %c0_101] : memref<8x8x2xf32, #tpu.memory_space<vmem>>, vector<1x8x2xf32>
    %321 = vector.shape_cast %320 : vector<1x8x2xf32> to vector<8x2xf32>
    %322 = arith.index_cast %c6_i32 : i32 to index
    %c0_102 = arith.constant 0 : index
    %323 = vector.load %arg3[%322, %c0_102] : memref<8x2xi32, #tpu.memory_space<vmem>>, vector<1x2xi32>
    %324 = arith.index_cast %c6_i32 : i32 to index
    %c0_103 = arith.constant 0 : index
    %325 = vector.load %arg4[%324, %c0_103] : memref<8x2xf32, #tpu.memory_space<vmem>>, vector<1x2xf32>
    %326 = vector.broadcast %323 : vector<1x2xi32> to vector<8x2xi32>
    %327 = arith.cmpi eq, %9, %326 : vector<8x2xi32>
    %328 = arith.extui %327 : vector<8x2xi1> to vector<8x2xi32>
    %329 = arith.sitofp %328 : vector<8x2xi32> to vector<8x2xf32>
    %330 = arith.mulf %321, %329 : vector<8x2xf32>
    %cst_104 = arith.constant dense<0.000000e+00> : vector<2xf32>
    %331 = vector.multi_reduction <add>, %330, %cst_104 [0] : vector<8x2xf32> to vector<2xf32>
    %332 = vector.shape_cast %331 : vector<2xf32> to vector<1x2xf32>
    %cst_105 = arith.constant dense<0.000000e+00> : vector<8x2xf32>
    %333 = tpu.matmul %1, %279, %cst_105 {dimension_numbers = #tpu.dot_dimension_numbers<[1], [0], [0], [1], [0, 0, 1, 1], [], []>} : vector<8x8xf32>, vector<8x2xf32>, vector<8x2xf32> -> vector<8x2xf32>
    %334 = arith.mulf %333, %329 : vector<8x2xf32>
    %cst_106 = arith.constant dense<0.000000e+00> : vector<2xf32>
    %335 = vector.multi_reduction <add>, %334, %cst_106 [0] : vector<8x2xf32> to vector<2xf32>
    %336 = vector.shape_cast %335 : vector<2xf32> to vector<1x2xf32>
    %cst_107 = arith.constant 0.000000e+00 : f32
    %337 = vector.broadcast %cst_107 : f32 to vector<1x2xf32>
    %338 = arith.select %318, %337, %336 : vector<1x2xf32>
    %339 = arith.addf %332, %338 : vector<1x2xf32>
    %340 = arith.mulf %339, %325 : vector<1x2xf32>
    %341 = arith.addf %291, %340 : vector<1x2xf32>
    %cst_108 = arith.constant dense<0xFF800000> : vector<2xf32>
    %342 = vector.multi_reduction <maximumf>, %311, %cst_108 [0] : vector<8x2xf32> to vector<2xf32>
    %343 = vector.shape_cast %342 : vector<2xf32> to vector<1x2xf32>
    %344 = vector.broadcast %343 : vector<1x2xf32> to vector<8x2xf32>
    %345 = arith.subf %311, %344 : vector<8x2xf32>
    %346 = math.exp %345 : vector<8x2xf32>
    %cst_109 = arith.constant dense<0.000000e+00> : vector<8x2xf32>
    %347 = tpu.matmul %8, %346, %cst_109 {dimension_numbers = #tpu.dot_dimension_numbers<[1], [0], [0], [1], [0, 0, 1, 1], [], []>} : vector<8x8xf32>, vector<8x2xf32>, vector<8x2xf32> -> vector<8x2xf32>
    %348 = vector.broadcast %343 : vector<1x2xf32> to vector<8x2xf32>
    %349 = arith.addf %321, %348 : vector<8x2xf32>
    %350 = vector.broadcast %5 : vector<8x1xf32> to vector<8x2xf32>
    %351 = arith.addf %349, %350 : vector<8x2xf32>
    %cst_110 = arith.constant 1.000000e-30 : f32
    %352 = vector.broadcast %cst_110 : f32 to vector<8x2xf32>
    %353 = arith.maximumf %347, %352 : vector<8x2xf32>
    %354 = math.log %353 : vector<8x2xf32>
    %355 = arith.addf %351, %354 : vector<8x2xf32>
    %cst_111 = arith.constant 0.000000e+00 : f32
    %356 = vector.broadcast %cst_111 : f32 to vector<1x2xf32>
    %357 = arith.cmpf one, %325, %356 : vector<1x2xf32>
    %358 = vector.shape_cast %357 : vector<1x2xi1> to vector<1x2xi1>
    %359 = vector.broadcast %358 : vector<1x2xi1> to vector<8x2xi1>
    %360 = arith.select %359, %355, %311 : vector<8x2xi1>, vector<8x2xf32>
    %361 = arith.select %318, %311, %360 : vector<8x2xf32>
    %cst_112 = arith.constant 0.000000e+00 : f32
    %362 = vector.broadcast %cst_112 : f32 to vector<1x2xf32>
    %363 = arith.cmpf one, %325, %362 : vector<1x2xf32>
    %364 = vector.shape_cast %363 : vector<1x2xi1> to vector<1x2xi1>
    %365 = vector.broadcast %364 : vector<1x2xi1> to vector<8x2xi1>
    %366 = arith.select %365, %329, %316 : vector<8x2xi1>, vector<8x2xf32>
    %c7_i32 = arith.constant 7 : i32
    %367 = arith.addi %0, %c7_i32 : i32
    %c0_i32_113 = arith.constant 0 : i32
    %368 = arith.cmpi eq, %367, %c0_i32_113 : i32
    %369 = arith.index_cast %c7_i32 : i32 to index
    %c0_114 = arith.constant 0 : index
    %c0_115 = arith.constant 0 : index
    %370 = vector.load %arg2[%369, %c0_114, %c0_115] : memref<8x8x2xf32, #tpu.memory_space<vmem>>, vector<1x8x2xf32>
    %371 = vector.shape_cast %370 : vector<1x8x2xf32> to vector<8x2xf32>
    %372 = arith.index_cast %c7_i32 : i32 to index
    %c0_116 = arith.constant 0 : index
    %373 = vector.load %arg3[%372, %c0_116] : memref<8x2xi32, #tpu.memory_space<vmem>>, vector<1x2xi32>
    %374 = arith.index_cast %c7_i32 : i32 to index
    %c0_117 = arith.constant 0 : index
    %375 = vector.load %arg4[%374, %c0_117] : memref<8x2xf32, #tpu.memory_space<vmem>>, vector<1x2xf32>
    %376 = vector.broadcast %373 : vector<1x2xi32> to vector<8x2xi32>
    %377 = arith.cmpi eq, %9, %376 : vector<8x2xi32>
    %378 = arith.extui %377 : vector<8x2xi1> to vector<8x2xi32>
    %379 = arith.sitofp %378 : vector<8x2xi32> to vector<8x2xf32>
    %380 = arith.mulf %371, %379 : vector<8x2xf32>
    %cst_118 = arith.constant dense<0.000000e+00> : vector<2xf32>
    %381 = vector.multi_reduction <add>, %380, %cst_118 [0] : vector<8x2xf32> to vector<2xf32>
    %382 = vector.shape_cast %381 : vector<2xf32> to vector<1x2xf32>
    %cst_119 = arith.constant dense<0.000000e+00> : vector<8x2xf32>
    %383 = tpu.matmul %1, %329, %cst_119 {dimension_numbers = #tpu.dot_dimension_numbers<[1], [0], [0], [1], [0, 0, 1, 1], [], []>} : vector<8x8xf32>, vector<8x2xf32>, vector<8x2xf32> -> vector<8x2xf32>
    %384 = arith.mulf %383, %379 : vector<8x2xf32>
    %cst_120 = arith.constant dense<0.000000e+00> : vector<2xf32>
    %385 = vector.multi_reduction <add>, %384, %cst_120 [0] : vector<8x2xf32> to vector<2xf32>
    %386 = vector.shape_cast %385 : vector<2xf32> to vector<1x2xf32>
    %cst_121 = arith.constant 0.000000e+00 : f32
    %387 = vector.broadcast %cst_121 : f32 to vector<1x2xf32>
    %388 = arith.select %368, %387, %386 : vector<1x2xf32>
    %389 = arith.addf %382, %388 : vector<1x2xf32>
    %390 = arith.mulf %389, %375 : vector<1x2xf32>
    %391 = arith.addf %341, %390 : vector<1x2xf32>
    %cst_122 = arith.constant dense<0xFF800000> : vector<2xf32>
    %392 = vector.multi_reduction <maximumf>, %361, %cst_122 [0] : vector<8x2xf32> to vector<2xf32>
    %393 = vector.shape_cast %392 : vector<2xf32> to vector<1x2xf32>
    %394 = vector.broadcast %393 : vector<1x2xf32> to vector<8x2xf32>
    %395 = arith.subf %361, %394 : vector<8x2xf32>
    %396 = math.exp %395 : vector<8x2xf32>
    %cst_123 = arith.constant dense<0.000000e+00> : vector<8x2xf32>
    %397 = tpu.matmul %8, %396, %cst_123 {dimension_numbers = #tpu.dot_dimension_numbers<[1], [0], [0], [1], [0, 0, 1, 1], [], []>} : vector<8x8xf32>, vector<8x2xf32>, vector<8x2xf32> -> vector<8x2xf32>
    %398 = vector.broadcast %393 : vector<1x2xf32> to vector<8x2xf32>
    %399 = arith.addf %371, %398 : vector<8x2xf32>
    %400 = vector.broadcast %5 : vector<8x1xf32> to vector<8x2xf32>
    %401 = arith.addf %399, %400 : vector<8x2xf32>
    %cst_124 = arith.constant 1.000000e-30 : f32
    %402 = vector.broadcast %cst_124 : f32 to vector<8x2xf32>
    %403 = arith.maximumf %397, %402 : vector<8x2xf32>
    %404 = math.log %403 : vector<8x2xf32>
    %405 = arith.addf %401, %404 : vector<8x2xf32>
    %cst_125 = arith.constant 0.000000e+00 : f32
    %406 = vector.broadcast %cst_125 : f32 to vector<1x2xf32>
    %407 = arith.cmpf one, %375, %406 : vector<1x2xf32>
    %408 = vector.shape_cast %407 : vector<1x2xi1> to vector<1x2xi1>
    %409 = vector.broadcast %408 : vector<1x2xi1> to vector<8x2xi1>
    %410 = arith.select %409, %405, %361 : vector<8x2xi1>, vector<8x2xf32>
    %411 = arith.select %368, %361, %410 : vector<8x2xf32>
    %cst_126 = arith.constant 0.000000e+00 : f32
    %412 = vector.broadcast %cst_126 : f32 to vector<1x2xf32>
    %413 = arith.cmpf one, %375, %412 : vector<1x2xf32>
    %414 = vector.shape_cast %413 : vector<1x2xi1> to vector<1x2xi1>
    %415 = vector.broadcast %414 : vector<1x2xi1> to vector<8x2xi1>
    %416 = arith.select %415, %379, %366 : vector<8x2xi1>, vector<8x2xf32>
    %c8_i32_127 = arith.constant 8 : i32
    %c0_128 = arith.constant 0 : index
    %c0_129 = arith.constant 0 : index
    %417 = vector.load %arg9[%c0_128, %c0_129] : memref<8x2xf32, #tpu.memory_space<vmem>>, vector<8x2xf32>
    tpu.vector_store %arg9[%c0_128, %c0_129], %411 {strides = array<i32>} : memref<8x2xf32, #tpu.memory_space<vmem>>, vector<8x2xf32>,
    %c0_130 = arith.constant 0 : index
    %c0_131 = arith.constant 0 : index
    %418 = vector.load %arg10[%c0_130, %c0_131] : memref<8x2xf32, #tpu.memory_space<vmem>>, vector<8x2xf32>
    tpu.vector_store %arg10[%c0_130, %c0_131], %379 {strides = array<i32>} : memref<8x2xf32, #tpu.memory_space<vmem>>, vector<8x2xf32>,
    %c0_132 = arith.constant 0 : index
    %c0_133 = arith.constant 0 : index
    %419 = vector.load %arg11[%c0_132, %c0_133] : memref<8x2xf32, #tpu.memory_space<vmem>>, vector<8x2xf32>
    tpu.vector_store %arg11[%c0_132, %c0_133], %416 {strides = array<i32>} : memref<8x2xf32, #tpu.memory_space<vmem>>, vector<8x2xf32>,
    %c0_134 = arith.constant 0 : index
    %c0_135 = arith.constant 0 : index
    %420 = vector.load %arg12[%c0_134, %c0_135] : memref<1x2xf32, #tpu.memory_space<vmem>>, vector<1x2xf32>
    tpu.vector_store %arg12[%c0_134, %c0_135], %391 {strides = array<i32>} : memref<1x2xf32, #tpu.memory_space<vmem>>, vector<1x2xf32>,
    %c0_i32_136 = arith.constant 0 : i32
    %421 = arith.cmpi eq, %arg1, %c0_i32_136 : i32
    %422 = arith.extui %421 : i1 to i32
    %c0_i32_137 = arith.constant 0 : i32
    %423 = arith.cmpi ne, %422, %c0_i32_137 : i32
    scf.if %423 {
      %424 = vector.broadcast %3 : vector<8x1xf32> to vector<8x2xf32>
      %425 = arith.mulf %416, %424 : vector<8x2xf32>
      %cst_138 = arith.constant dense<0.000000e+00> : vector<2xf32>
      %426 = vector.multi_reduction <add>, %425, %cst_138 [0] : vector<8x2xf32> to vector<2xf32>
      %427 = vector.shape_cast %426 : vector<2xf32> to vector<1x2xf32>
      %428 = arith.addf %391, %427 : vector<1x2xf32>
      %429 = vector.broadcast %3 : vector<8x1xf32> to vector<8x2xf32>
      %430 = arith.addf %411, %429 : vector<8x2xf32>
      %cst_139 = arith.constant dense<0xFF800000> : vector<2xf32>
      %431 = vector.multi_reduction <maximumf>, %430, %cst_139 [0] : vector<8x2xf32> to vector<2xf32>
      %432 = vector.shape_cast %431 : vector<2xf32> to vector<1x2xf32>
      %433 = vector.broadcast %432 : vector<1x2xf32> to vector<8x2xf32>
      %434 = arith.subf %430, %433 : vector<8x2xf32>
      %435 = math.exp %434 : vector<8x2xf32>
      %cst_140 = arith.constant dense<0.000000e+00> : vector<2xf32>
      %436 = vector.multi_reduction <add>, %435, %cst_140 [0] : vector<8x2xf32> to vector<2xf32>
      %437 = vector.shape_cast %436 : vector<2xf32> to vector<1x2xf32>
      %438 = math.log %437 : vector<1x2xf32>
      %439 = arith.addf %432, %438 : vector<1x2xf32>
      %440 = arith.subf %428, %439 : vector<1x2xf32>
      %c0_141 = arith.constant 0 : index
      %c0_142 = arith.constant 0 : index
      %441 = vector.load %arg8[%c0_141, %c0_142] : memref<1x2xf32, #tpu.memory_space<vmem>>, vector<1x2xf32>
      tpu.vector_store %arg8[%c0_141, %c0_142], %440 {strides = array<i32>} : memref<1x2xf32, #tpu.memory_space<vmem>>, vector<1x2xf32>,
    } else {
    }
    return
  }
  func.func @transform_0(%arg0: i32, %arg1: i32) -> (i32, i32, i32) {
    %c0_i32 = arith.constant 0 : i32
    %c0_i32_0 = arith.constant 0 : i32
    return %arg1, %c0_i32, %arg0 : i32, i32, i32
  }
  func.func @transform_1(%arg0: i32, %arg1: i32) -> (i32, i32) {
    %c0_i32 = arith.constant 0 : i32
    return %arg1, %arg0 : i32, i32
  }
  func.func @transform_2(%arg0: i32, %arg1: i32) -> (i32, i32) {
    %c0_i32 = arith.constant 0 : i32
    return %arg1, %arg0 : i32, i32
  }
  func.func @transform_3(%arg0: i32, %arg1: i32) -> (i32, i32) {
    %c0_i32 = arith.constant 0 : i32
    %c0_i32_0 = arith.constant 0 : i32
    %c0_i32_1 = arith.constant 0 : i32
    return %c0_i32, %c0_i32_0 : i32, i32
  }
  func.func @transform_4(%arg0: i32, %arg1: i32) -> (i32, i32) {
    %c0_i32 = arith.constant 0 : i32
    %c0_i32_0 = arith.constant 0 : i32
    %c0_i32_1 = arith.constant 0 : i32
    return %c0_i32, %c0_i32_0 : i32, i32
  }
  func.func @transform_5(%arg0: i32, %arg1: i32) -> (i32, i32) {
    %c0_i32 = arith.constant 0 : i32
    %c0_i32_0 = arith.constant 0 : i32
    %c0_i32_1 = arith.constant 0 : i32
    return %c0_i32, %c0_i32_0 : i32, i32
  }
  func.func @transform_6(%arg0: i32, %arg1: i32) -> (i32, i32) {
    %c0_i32 = arith.constant 0 : i32
    %c0_i32_0 = arith.constant 0 : i32
    return %c0_i32, %arg0 : i32, i32
  }
}

</mosaic_0001>

<llo_original>
// kernel: tpu_custom_call.1
$region0: #{tpu_custom_call.1}
  #allocation0 [shape = 'u32[]', space=smem, size = 0x4, offset = 0x4, fixed_abs, tag = 'smem constant byte address 0x4 - core index']
  #allocation1 [shape = 'u32[144,128]{1,0:T(1,128)}', space=vmem, size = 0x12000, scoped, tag = 'internal scratch']
  #allocation2 [shape = 'f32[8,2]{1,0:T(8,128)}', space=vmem, size = 0x1000, scoped, tag = 'scratch operand']
  #allocation3 [shape = 'f32[8,2]{1,0:T(8,128)}', space=vmem, size = 0x1000, scoped, tag = 'scratch operand']
  #allocation4 [shape = 'f32[8,2]{1,0:T(8,128)}', space=vmem, size = 0x1000, scoped, tag = 'scratch operand']
  #allocation5 [shape = 'f32[1,2]{1,0:T(1,128)}', space=vmem, size = 0x200, scoped, tag = 'scratch operand']
  %s0 = inlined_call_operand.hbm [shape: f32[8,8,2], index: 0, kind: input, shape index: {}]
  %s1 = inlined_call_operand.hbm [shape: s32[8,2], index: 1, kind: input, shape index: {}]
  %s2 = inlined_call_operand.hbm [shape: f32[8,2], index: 2, kind: input, shape index: {}]
  %s3 = inlined_call_operand.hbm [shape: f32[8,8], index: 3, kind: input, shape index: {}]
  %s4 = inlined_call_operand.hbm [shape: f32[8,1], index: 4, kind: input, shape index: {}]
  %s5 = inlined_call_operand.hbm [shape: f32[8,1], index: 5, kind: input, shape index: {}]
  %s6 = inlined_call_operand.hbm [shape: f32[1,2], index: 6, kind: output, shape index: {}]
  %s7 = sld [smem:[#allocation0]]
  $region66: #{tpu_custom_call.1} parent=0
    _
  %s9 = ssub.s32 1, %s7
  %s10 = scalar_select 0, %s9, %s7
  $region1: #{tpu_custom_call.1} parent=0
    #allocation6 [shape = 'u8[32768]{0}', space=vmem, size = 0x8000, scoped, tag = 'input window, operand 0, single buffered']
    #allocation7 [shape = 's32[1]{0}', space=sflag, size = 0x4, scoped, tag = 'scoped memory for tpu_custom_call.1']
    #allocation8 [shape = 's32[1]{0}', space=sflag, size = 0x4, scoped, tag = 'scoped memory for tpu_custom_call.1']
    #allocation9 [shape = 'u8[4096]{0}', space=vmem, size = 0x1000, scoped, tag = 'input window, operand 1, single buffered']
    #allocation10 [shape = 's32[1]{0}', space=sflag, size = 0x4, scoped, tag = 'scoped memory for tpu_custom_call.1']
    #allocation11 [shape = 'u8[4096]{0}', space=vmem, size = 0x1000, scoped, tag = 'input window, operand 2, single buffered']
    #allocation12 [shape = 'u8[4096]{0}', space=vmem, size = 0x1000, scoped, tag = 'input window, operand 3, single buffered']
    #allocation13 [shape = 's32[1]{0}', space=sflag, size = 0x4, scoped, tag = 'scoped memory for tpu_custom_call.1']
    #allocation14 [shape = 'u8[4096]{0}', space=vmem, size = 0x1000, scoped, tag = 'input window, operand 4, single buffered']
    #allocation15 [shape = 'u8[4096]{0}', space=vmem, size = 0x1000, scoped, tag = 'input window, operand 5, single buffered']
    #allocation16 [shape = 's32[1]{0}', space=sflag, size = 0x4, scoped, tag = 'scoped memory for tpu_custom_call.1']
    #allocation17 [shape = 'u8[512]{0}', space=vmem, size = 0x400, scoped, tag = 'output window, operand 0, single buffered']
    %11 = vsyncpa [#allocation7], 0
    %12 = vsyncpa [#allocation10], 0
    %13 = vsyncpa [#allocation13], 0
    %14 = vsyncpa [#allocation16], 0
    %15 = vsyncpa [#allocation8], 0
    // Predicated region
    $region2: #{tpu_custom_call.1} parent=1 // pred_check
      _
    $region3: #{tpu_custom_call.1} parent=1 // pred_check_branch
      %17 = sbr.rel (0) target = $region5
    $region4: #{tpu_custom_call.1} parent=1 // pred_region
      %s19 = ssub.s32 1024, 1024
      %20 = vsyncadd [#allocation7], %s19
      %s21 = sshll.u32 [#allocation6], 4
      %s22 = int_to_ptr.vmem [resolvable:$true] %s21
      %27 = dma.hbm_to_vmem [thread:$0]  %s0, 1024, %s22, [#allocation7], 128, 128, 8
    $region5: #{tpu_custom_call.1} parent=1 // pred_fallthru
      _
    // Predicated region
    $region6: #{tpu_custom_call.1} parent=1 // pred_check
      _
    $region7: #{tpu_custom_call.1} parent=1 // pred_check_branch
      %29 = sbr.rel (0) target = $region9
    $region8: #{tpu_custom_call.1} parent=1 // pred_region
      %s31 = ssub.s32 128, 128
      %32 = vsyncadd [#allocation10], %s31
      %s34 = sshll.u32 [#allocation9], 4
      %s35 = int_to_ptr.vmem [resolvable:$true] %s34
      %37 = dma.hbm_to_vmem [thread:$0]  %s1, 128, %s35, [#allocation10]
    $region9: #{tpu_custom_call.1} parent=1 // pred_fallthru
      _
    // Predicated region
    $region10: #{tpu_custom_call.1} parent=1 // pred_check
      _
    $region11: #{tpu_custom_call.1} parent=1 // pred_check_branch
      %39 = sbr.rel (0) target = $region13
    $region12: #{tpu_custom_call.1} parent=1 // pred_region
      %s41 = ssub.s32 128, 128
      %42 = vsyncadd [#allocation10], %s41
      %s44 = sshll.u32 [#allocation11], 4
      %s45 = int_to_ptr.vmem [resolvable:$true] %s44
      %47 = dma.hbm_to_vmem [thread:$0]  %s2, 128, %s45, [#allocation10]
    $region13: #{tpu_custom_call.1} parent=1 // pred_fallthru
      _
    // Predicated region
    $region14: #{tpu_custom_call.1} parent=1 // pred_check
      _
    $region15: #{tpu_custom_call.1} parent=1 // pred_check_branch
      %49 = sbr.rel (0) target = $region17
    $region16: #{tpu_custom_call.1} parent=1 // pred_region
      %s51 = ssub.s32 128, 128
      %52 = vsyncadd [#allocation13], %s51
      %s54 = sshll.u32 [#allocation12], 4
      %s55 = int_to_ptr.vmem [resolvable:$true] %s54
      %57 = dma.hbm_to_vmem [thread:$0]  %s3, 128, %s55, [#allocation13]
    $region17: #{tpu_custom_call.1} parent=1 // pred_fallthru
      _
    // Predicated region
    $region18: #{tpu_custom_call.1} parent=1 // pred_check
      _
    $region19: #{tpu_custom_call.1} parent=1 // pred_check_branch
      %59 = sbr.rel (0) target = $region21
    $region20: #{tpu_custom_call.1} parent=1 // pred_region
      %s61 = ssub.s32 128, 128
      %62 = vsyncadd [#allocation13], %s61
      %s64 = sshll.u32 [#allocation14], 4
      %s65 = int_to_ptr.vmem [resolvable:$true] %s64
      %67 = dma.hbm_to_vmem [thread:$0]  %s4, 128, %s65, [#allocation13]
    $region21: #{tpu_custom_call.1} parent=1 // pred_fallthru
      _
    // Predicated region
    $region22: #{tpu_custom_call.1} parent=1 // pred_check
      _
    $region23: #{tpu_custom_call.1} parent=1 // pred_check_branch
      %69 = sbr.rel (0) target = $region25
    $region24: #{tpu_custom_call.1} parent=1 // pred_region
      %s71 = ssub.s32 128, 128
      %72 = vsyncadd [#allocation16], %s71
      %s74 = sshll.u32 [#allocation15], 4
      %s75 = int_to_ptr.vmem [resolvable:$true] %s74
      %77 = dma.hbm_to_vmem [thread:$0]  %s5, 128, %s75, [#allocation16]
    $region25: #{tpu_custom_call.1} parent=1 // pred_fallthru
      _
    // Predicated region
    $region26: #{tpu_custom_call.1} parent=1 // pred_check
      _
    $region27: #{tpu_custom_call.1} parent=1 // pred_check_branch
      %79 = sbr.rel (0) target = $region29
    $region28: #{tpu_custom_call.1} parent=1 // pred_region
      %80 = dma.done [#allocation7], 1024
    $region29: #{tpu_custom_call.1} parent=1 // pred_fallthru
      _
    // Predicated region
    $region30: #{tpu_custom_call.1} parent=1 // pred_check
      _
    $region31: #{tpu_custom_call.1} parent=1 // pred_check_branch
      %82 = sbr.rel (0) target = $region33
    $region32: #{tpu_custom_call.1} parent=1 // pred_region
      %83 = dma.done [#allocation10], 128
    $region33: #{tpu_custom_call.1} parent=1 // pred_fallthru
      _
    // Predicated region
    $region34: #{tpu_custom_call.1} parent=1 // pred_check
      _
    $region35: #{tpu_custom_call.1} parent=1 // pred_check_branch
      %85 = sbr.rel (0) target = $region37
    $region36: #{tpu_custom_call.1} parent=1 // pred_region
      %86 = dma.done [#allocation10], 128
    $region37: #{tpu_custom_call.1} parent=1 // pred_fallthru
      _
    // Predicated region
    $region38: #{tpu_custom_call.1} parent=1 // pred_check
      _
    $region39: #{tpu_custom_call.1} parent=1 // pred_check_branch
      %88 = sbr.rel (0) target = $region41
    $region40: #{tpu_custom_call.1} parent=1 // pred_region
      %89 = dma.done [#allocation13], 128
    $region41: #{tpu_custom_call.1} parent=1 // pred_fallthru
      _
    // Predicated region
    $region42: #{tpu_custom_call.1} parent=1 // pred_check
      _
    $region43: #{tpu_custom_call.1} parent=1 // pred_check_branch
      %91 = sbr.rel (0) target = $region45
    $region44: #{tpu_custom_call.1} parent=1 // pred_region
      %92 = dma.done [#allocation13], 128
    $region45: #{tpu_custom_call.1} parent=1 // pred_fallthru
      _
    // Predicated region
    $region46: #{tpu_custom_call.1} parent=1 // pred_check
      _
    $region47: #{tpu_custom_call.1} parent=1 // pred_check_branch
      %94 = sbr.rel (0) target = $region49
    $region48: #{tpu_custom_call.1} parent=1 // pred_region
      %95 = dma.done [#allocation16], 128
    $region49: #{tpu_custom_call.1} parent=1 // pred_fallthru
      _
    %s96 = smul.u32 0, 8
    %v97 = vld [vmem:[#allocation12] sm:$0xff]
    %v98 = vld [vmem:[#allocation14] sm:$0xff]
    %v99 = vld [vmem:[#allocation15] sm:$0xff]
    %vm100 = vcmask 64512
    %v101 = vsel %vm100, %v97, -inf
    %102 = vmax.xlane.f32.xlu0 %v101
    %v103 = vpop.xlane.xlu0 %102
    %v104 = vsub.f32 %v97, %v103
    %v105 = vmul.f32 %v104, 1.442695
    %v106 = vpow.pop %v105
    %v107 = vlaneseq
    %v108 = vshrl.u32 %v107, 7
    %p109 = scmp.eq.s32.totalorder 0, 0
    // Predicated region
    $region50: #{tpu_custom_call.1} parent=1 // pred_check
      %p110 = pneg %p109
    $region51: #{tpu_custom_call.1} parent=1 // pred_check_branch
      %112 = sbr.rel (%p110) target = $region53
    $region52: #{tpu_custom_call.1} parent=1 // pred_region
      %v113 = vld [vmem:[#allocation9] sm:$0x1]
      %v114 = vlaneseq
      %v115 = vshrl.u32 %v114, 7
      %v116 = vsub.s32 0, %v115
      %v117 = vrot.slane %v113, %v116
      %vm118 = vcmp.eq.s32.totalorder %v108, %v117
      %v119 = vsel %vm118, 1, 0
      %v120 = vcvt.s32.f32 %v119
      %v121 = vld [vmem:[#allocation6] sm:$0xff]
      %123 = vset.pattern.permute.xlu0 0
      %124 = vperm.xlu0 %123, %v98
      %v125 = vpop.permute.xlu0 %124
      %v127 = vadd.f32 %v125, %v121
      %vm128 = vcmask 15360
      %129 = vst.msk [vmem:[#allocation2] sm:$0xff] %vm128, %v127
      %130 = vst.msk [vmem:[#allocation3] sm:$0xff] %vm128, %v120
      %131 = vst.msk [vmem:[#allocation4] sm:$0xff] %vm128, 0.0
      %v132 = vmul.f32 %v125, %v120
      %v133 = vsel %vm128, %v132, 0.0
      %v134 = vrot.slane %v133, 4
      %v135 = vadd.f32 %v133, %v134
      %v136 = vrot.slane %v135, 2
      %v137 = vadd.f32 %v135, %v136
      %v138 = vrot.slane %v137, 1
      %v139 = vadd.f32 %v137, %v138
      %vm140 = vcmask 8192
      %141 = vst.msk [vmem:[#allocation5] sm:$0x1] %vm140, %v139
    $region53: #{tpu_custom_call.1} parent=1 // pred_fallthru
      _
    %v142 = vld [vmem:[#allocation2] sm:$0xff]
    %v143 = vld [vmem:[#allocation3] sm:$0xff]
    %v144 = vld [vmem:[#allocation4] sm:$0xff]
    %v145 = vld [vmem:[#allocation5] sm:$0x1]
    %p146 = scmp.eq.s32.totalorder %s96, 0
    %v147 = vld [vmem:[#allocation6] sm:$0xff]
    %v148 = vld [vmem:[#allocation9] sm:$0x1]
    %v149 = vld [vmem:[#allocation11] sm:$0x1]
    %v150 = vlaneseq
    %v151 = vshrl.u32 %v150, 7
    %v152 = vsub.s32 0, %v151
    %v153 = vrot.slane %v148, %v152
    %vm154 = vcmp.eq.s32.totalorder %v108, %v153
    %v155 = vsel %vm154, 1, 0
    %v156 = vcvt.s32.f32 %v155
    %v157 = vmul.f32 %v147, %v156
    %vm158 = vcmask 15360
    %v159 = vsel %vm158, %v157, 0.0
    %v160 = vrot.slane %v159, 4
    %v161 = vadd.f32 %v159, %v160
    %v162 = vrot.slane %v161, 2
    %v163 = vadd.f32 %v161, %v162
    %v164 = vrot.slane %v163, 1
    %v165 = vadd.f32 %v163, %v164
    %v167 = vsel %vm100, %v97, 0
    %169 = vmatprep.subr.mxu0 0.0
    %170 = vmatpush1.msra.mxu0 %v143
    %171 = vmatprep.subr.mxu0 0.0
    %172 = vmatpush1.msra.mxu0 0.0
    %173 = vmatprep.subr.mxu0 0.0
    %174 = vmatpush1.msra.mxu0 0.0
    %175 = vmatprep.subr.mxu0 0.0
    %176 = vmatpush1.msra.mxu0 0.0
    %177 = vmatprep.subr.mxu0 0.0
    %178 = vmatpush1.msra.mxu0 0.0
    %179 = vmatprep.subr.mxu0 0.0
    %180 = vmatpush1.msra.mxu0 0.0
    %181 = vmatprep.subr.mxu0 0.0
    %182 = vmatpush1.msra.mxu0 0.0
    %183 = vmatprep.subr.mxu0 0.0
    %184 = vmatpush1.msra.mxu0 0.0
    %185 = vmatprep.subr.mxu0 0.0
    %186 = vmatpush1.msra.mxu0 0.0
    %187 = vmatprep.subr.mxu0 0.0
    %188 = vmatpush1.msra.mxu0 0.0
    %189 = vmatprep.subr.mxu0 0.0
    %190 = vmatpush1.msra.mxu0 0.0
    %191 = vmatprep.subr.mxu0 0.0
    %192 = vmatpush1.msra.mxu0 0.0
    %193 = vmatprep.subr.mxu0 0.0
    %194 = vmatpush1.msra.mxu0 0.0
    %195 = vmatprep.subr.mxu0 0.0
    %196 = vmatpush1.msra.mxu0 0.0
    %197 = vmatprep.subr.mxu0 0.0
    %198 = vmatpush1.msra.mxu0 0.0
    %199 = vmatprep.subr.mxu0 0.0
    %200 = vmatpush1.msra.mxu0 0.0
    %201 = vmatprep.subr.mxu0 0.0
    %202 = vmatpush1.msra.mxu0 0.0
    %203 = vmatprep.subr.mxu0 0.0
    %204 = vmatpush1.msra.mxu0 0.0
    %205 = vmatprep.subr.mxu0 0.0
    %206 = vmatpush1.msra.mxu0 0.0
    %207 = vmatprep.subr.mxu0 0.0
    %208 = vmatpush1.msra.mxu0 0.0
    %209 = vmatprep.subr.mxu0 0.0
    %210 = vmatpush1.msra.mxu0 0.0
    %211 = vmatprep.subr.mxu0 0.0
    %212 = vmatpush1.msra.mxu0 0.0
    %213 = vmatprep.subr.mxu0 0.0
    %214 = vmatpush1.msra.mxu0 0.0
    %215 = vmatprep.subr.mxu0 0.0
    %216 = vmatpush1.msra.mxu0 0.0
    %217 = vmatprep.subr.mxu0 0.0
    %218 = vmatpush1.msra.mxu0 0.0
    %219 = vmatprep.subr.mxu0 0.0
    %220 = vmatpush1.msra.mxu0 0.0
    %221 = vmatprep.subr.mxu0 0.0
    %222 = vmatpush1.msra.mxu0 0.0
    %223 = vmatprep.subr.mxu0 0.0
    %224 = vmatpush1.msra.mxu0 0.0
    %225 = vmatprep.subr.mxu0 0.0
    %226 = vmatpush1.msra.mxu0 0.0
    %227 = vmatprep.subr.mxu0 0.0
    %228 = vmatpush1.msra.mxu0 0.0
    %229 = vmatprep.subr.mxu0 0.0
    %230 = vmatpush1.msra.mxu0 0.0
    %231 = vmatprep.subr.mxu0 0.0
    %232 = vmatpush1.msra.mxu0 0.0
    %233 = vmatprep.mubr.f32.mxu0 0.0
    %234 = vmatmul.mubr.f32.gmra.mrb[0].mxu0 %v167
    %v235 = vpop.f32.mrb[0].mxu0
    %v236 = vadd.f32 0.0, %v235
    %v237 = vpop.f32.mrb[0].mxu0
    %238 = vdwg.mxu0
    %v239 = vmul.f32 %v236, %v156
    %v240 = vsel %vm158, %v239, 0.0
    %v241 = vrot.slane %v240, 4
    %v242 = vadd.f32 %v240, %v241
    %v243 = vrot.slane %v242, 2
    %v244 = vadd.f32 %v242, %v243
    %v245 = vrot.slane %v244, 1
    %v246 = vadd.f32 %v244, %v245
    %s247 = scalar_select %p146, 1, 0
    %v248 = vstv %s247
    %vm249 = vcmp.eq.s32.totalorder %v248, 1
    %v250 = vsel %vm249, 0.0, %v246
    %v251 = vadd.f32 %v165, %v250
    %v252 = vmul.f32 %v251, %v149
    %v253 = vadd.f32 %v145, %v252
    %v254 = vsel %vm158, %v142, -inf
    %v255 = vrot.slane %v254, 4
    %v256 = vmax.f32 %v254, %v255
    %v257 = vrot.slane %v256, 2
    %v258 = vmax.f32 %v256, %v257
    %v259 = vrot.slane %v258, 1
    %v260 = vmax.f32 %v258, %v259
    %v261 = vsub.f32 %v142, %v260
    %v262 = vmul.f32 %v261, 1.442695
    %v263 = vpow.pop %v262
    %v265 = vsel %vm100, %v106, 0
    %267 = vmatprep.subr.mxu0 0.0
    %268 = vmatpush1.msra.mxu0 %v263
    %269 = vmatprep.subr.mxu0 0.0
    %270 = vmatpush1.msra.mxu0 0.0
    %271 = vmatprep.subr.mxu0 0.0
    %272 = vmatpush1.msra.mxu0 0.0
    %273 = vmatprep.subr.mxu0 0.0
    %274 = vmatpush1.msra.mxu0 0.0
    %275 = vmatprep.subr.mxu0 0.0
    %276 = vmatpush1.msra.mxu0 0.0
    %277 = vmatprep.subr.mxu0 0.0
    %278 = vmatpush1.msra.mxu0 0.0
    %279 = vmatprep.subr.mxu0 0.0
    %280 = vmatpush1.msra.mxu0 0.0
    %281 = vmatprep.subr.mxu0 0.0
    %282 = vmatpush1.msra.mxu0 0.0
    %283 = vmatprep.subr.mxu0 0.0
    %284 = vmatpush1.msra.mxu0 0.0
    %285 = vmatprep.subr.mxu0 0.0
    %286 = vmatpush1.msra.mxu0 0.0
    %287 = vmatprep.subr.mxu0 0.0
    %288 = vmatpush1.msra.mxu0 0.0
    %289 = vmatprep.subr.mxu0 0.0
    %290 = vmatpush1.msra.mxu0 0.0
    %291 = vmatprep.subr.mxu0 0.0
    %292 = vmatpush1.msra.mxu0 0.0
    %293 = vmatprep.subr.mxu0 0.0
    %294 = vmatpush1.msra.mxu0 0.0
    %295 = vmatprep.subr.mxu0 0.0
    %296 = vmatpush1.msra.mxu0 0.0
    %297 = vmatprep.subr.mxu0 0.0
    %298 = vmatpush1.msra.mxu0 0.0
    %299 = vmatprep.subr.mxu0 0.0
    %300 = vmatpush1.msra.mxu0 0.0
    %301 = vmatprep.subr.mxu0 0.0
    %302 = vmatpush1.msra.mxu0 0.0
    %303 = vmatprep.subr.mxu0 0.0
    %304 = vmatpush1.msra.mxu0 0.0
    %305 = vmatprep.subr.mxu0 0.0
    %306 = vmatpush1.msra.mxu0 0.0
    %307 = vmatprep.subr.mxu0 0.0
    %308 = vmatpush1.msra.mxu0 0.0
    %309 = vmatprep.subr.mxu0 0.0
    %310 = vmatpush1.msra.mxu0 0.0
    %311 = vmatprep.subr.mxu0 0.0
    %312 = vmatpush1.msra.mxu0 0.0
    %313 = vmatprep.subr.mxu0 0.0
    %314 = vmatpush1.msra.mxu0 0.0
    %315 = vmatprep.subr.mxu0 0.0
    %316 = vmatpush1.msra.mxu0 0.0
    %317 = vmatprep.subr.mxu0 0.0
    %318 = vmatpush1.msra.mxu0 0.0
    %319 = vmatprep.subr.mxu0 0.0
    %320 = vmatpush1.msra.mxu0 0.0
    %321 = vmatprep.subr.mxu0 0.0
    %322 = vmatpush1.msra.mxu0 0.0
    %323 = vmatprep.subr.mxu0 0.0
    %324 = vmatpush1.msra.mxu0 0.0
    %325 = vmatprep.subr.mxu0 0.0
    %326 = vmatpush1.msra.mxu0 0.0
    %327 = vmatprep.subr.mxu0 0.0
    %328 = vmatpush1.msra.mxu0 0.0
    %329 = vmatprep.subr.mxu0 0.0
    %330 = vmatpush1.msra.mxu0 0.0
    %331 = vmatprep.mubr.f32.mxu0 0.0
    %332 = vmatmul.mubr.f32.gmra.mrb[0].mxu0 %v265
    %v333 = vpop.f32.mrb[0].mxu0
    %v334 = vadd.f32 0.0, %v333
    %v335 = vpop.f32.mrb[0].mxu0
    %336 = vdwg.mxu0
    %v337 = vadd.f32 %v147, %v260
    %v338 = vadd.f32 %v337, %v103
    %v339 = vmax.f32 %v334, 1e-30
    %v340 = vlog2.pop %v339
    %v341 = vmul.f32 %v340, 0.6931472
    %v342 = vadd.f32 %v338, %v341
    %vm343 = vcmp.ne.f32.partialorder %v149, 0.0
    %v344 = vsel %vm343, 1, 0
    %v345 = vlaneseq
    %v346 = vshrl.u32 %v345, 7
    %v347 = vsub.s32 0, %v346
    %v348 = vrot.slane %v344, %v347
    %vm349 = vcmp.eq.s32.totalorder %v348, 1
    %v350 = vsel %vm349, %v342, %v142
    %v351 = vsel %vm249, %v142, %v350
    %v352 = vsel %vm349, %v156, %v144
    %s353 = sadd.s32 %s96, 1
    %p354 = scmp.eq.s32.totalorder %s353, 0
    %s355 = scalar_lea.vmem [#allocation6], 8
    %v356 = vld [vmem:[%s355] sm:$0xff]
    %v357 = vld [vmem:[#allocation9 + $0x1] sm:$0x1]
    %v358 = vld [vmem:[#allocation11 + $0x1] sm:$0x1]
    %v359 = vlaneseq
    %v360 = vshrl.u32 %v359, 7
    %v361 = vsub.s32 0, %v360
    %v362 = vrot.slane %v357, %v361
    %vm363 = vcmp.eq.s32.totalorder %v108, %v362
    %v364 = vsel %vm363, 1, 0
    %v365 = vcvt.s32.f32 %v364
    %v366 = vmul.f32 %v356, %v365
    %v367 = vsel %vm158, %v366, 0.0
    %v368 = vrot.slane %v367, 4
    %v369 = vadd.f32 %v367, %v368
    %v370 = vrot.slane %v369, 2
    %v371 = vadd.f32 %v369, %v370
    %v372 = vrot.slane %v371, 1
    %v373 = vadd.f32 %v371, %v372
    %374 = vmatprep.subr.mxu0 0.0
    %375 = vmatpush1.msra.mxu0 %v156
    %376 = vmatprep.subr.mxu0 0.0
    %377 = vmatpush1.msra.mxu0 0.0
    %378 = vmatprep.subr.mxu0 0.0
    %379 = vmatpush1.msra.mxu0 0.0
    %380 = vmatprep.subr.mxu0 0.0
    %381 = vmatpush1.msra.mxu0 0.0
    %382 = vmatprep.subr.mxu0 0.0
    %383 = vmatpush1.msra.mxu0 0.0
    %384 = vmatprep.subr.mxu0 0.0
    %385 = vmatpush1.msra.mxu0 0.0
    %386 = vmatprep.subr.mxu0 0.0
    %387 = vmatpush1.msra.mxu0 0.0
    %388 = vmatprep.subr.mxu0 0.0
    %389 = vmatpush1.msra.mxu0 0.0
    %390 = vmatprep.subr.mxu0 0.0
    %391 = vmatpush1.msra.mxu0 0.0
    %392 = vmatprep.subr.mxu0 0.0
    %393 = vmatpush1.msra.mxu0 0.0
    %394 = vmatprep.subr.mxu0 0.0
    %395 = vmatpush1.msra.mxu0 0.0
    %396 = vmatprep.subr.mxu0 0.0
    %397 = vmatpush1.msra.mxu0 0.0
    %398 = vmatprep.subr.mxu0 0.0
    %399 = vmatpush1.msra.mxu0 0.0
    %400 = vmatprep.subr.mxu0 0.0
    %401 = vmatpush1.msra.mxu0 0.0
    %402 = vmatprep.subr.mxu0 0.0
    %403 = vmatpush1.msra.mxu0 0.0
    %404 = vmatprep.subr.mxu0 0.0
    %405 = vmatpush1.msra.mxu0 0.0
    %406 = vmatprep.subr.mxu0 0.0
    %407 = vmatpush1.msra.mxu0 0.0
    %408 = vmatprep.subr.mxu0 0.0
    %409 = vmatpush1.msra.mxu0 0.0
    %410 = vmatprep.subr.mxu0 0.0
    %411 = vmatpush1.msra.mxu0 0.0
    %412 = vmatprep.subr.mxu0 0.0
    %413 = vmatpush1.msra.mxu0 0.0
    %414 = vmatprep.subr.mxu0 0.0
    %415 = vmatpush1.msra.mxu0 0.0
    %416 = vmatprep.subr.mxu0 0.0
    %417 = vmatpush1.msra.mxu0 0.0
    %418 = vmatprep.subr.mxu0 0.0
    %419 = vmatpush1.msra.mxu0 0.0
    %420 = vmatprep.subr.mxu0 0.0
    %421 = vmatpush1.msra.mxu0 0.0
    %422 = vmatprep.subr.mxu0 0.0
    %423 = vmatpush1.msra.mxu0 0.0
    %424 = vmatprep.subr.mxu0 0.0
    %425 = vmatpush1.msra.mxu0 0.0
    %426 = vmatprep.subr.mxu0 0.0
    %427 = vmatpush1.msra.mxu0 0.0
    %428 = vmatprep.subr.mxu0 0.0
    %429 = vmatpush1.msra.mxu0 0.0
    %430 = vmatprep.subr.mxu0 0.0
    %431 = vmatpush1.msra.mxu0 0.0
    %432 = vmatprep.subr.mxu0 0.0
    %433 = vmatpush1.msra.mxu0 0.0
    %434 = vmatprep.subr.mxu0 0.0
    %435 = vmatpush1.msra.mxu0 0.0
    %436 = vmatprep.subr.mxu0 0.0
    %437 = vmatpush1.msra.mxu0 0.0
    %438 = vmatprep.mubr.f32.mxu0 0.0
    %439 = vmatmul.mubr.f32.gmra.mrb[0].mxu0 %v167
    %v440 = vpop.f32.mrb[0].mxu0
    %v441 = vadd.f32 0.0, %v440
    %v442 = vpop.f32.mrb[0].mxu0
    %443 = vdwg.mxu0
    %v444 = vmul.f32 %v441, %v365
    %v445 = vsel %vm158, %v444, 0.0
    %v446 = vrot.slane %v445, 4
    %v447 = vadd.f32 %v445, %v446
    %v448 = vrot.slane %v447, 2
    %v449 = vadd.f32 %v447, %v448
    %v450 = vrot.slane %v449, 1
    %v451 = vadd.f32 %v449, %v450
    %s452 = scalar_select %p354, 1, 0
    %v453 = vstv %s452
    %vm454 = vcmp.eq.s32.totalorder %v453, 1
    %v455 = vsel %vm454, 0.0, %v451
    %v456 = vadd.f32 %v373, %v455
    %v457 = vmul.f32 %v456, %v358
    %v458 = vadd.f32 %v253, %v457
    %v459 = vsel %vm158, %v351, -inf
    %v460 = vrot.slane %v459, 4
    %v461 = vmax.f32 %v459, %v460
    %v462 = vrot.slane %v461, 2
    %v463 = vmax.f32 %v461, %v462
    %v464 = vrot.slane %v463, 1
    %v465 = vmax.f32 %v463, %v464
    %v466 = vsub.f32 %v351, %v465
    %v467 = vmul.f32 %v466, 1.442695
    %v468 = vpow.pop %v467
    %469 = vmatprep.subr.mxu0 0.0
    %470 = vmatpush1.msra.mxu0 %v468
    %471 = vmatprep.subr.mxu0 0.0
    %472 = vmatpush1.msra.mxu0 0.0
    %473 = vmatprep.subr.mxu0 0.0
    %474 = vmatpush1.msra.mxu0 0.0
    %475 = vmatprep.subr.mxu0 0.0
    %476 = vmatpush1.msra.mxu0 0.0
    %477 = vmatprep.subr.mxu0 0.0
    %478 = vmatpush1.msra.mxu0 0.0
    %479 = vmatprep.subr.mxu0 0.0
    %480 = vmatpush1.msra.mxu0 0.0
    %481 = vmatprep.subr.mxu0 0.0
    %482 = vmatpush1.msra.mxu0 0.0
    %483 = vmatprep.subr.mxu0 0.0
    %484 = vmatpush1.msra.mxu0 0.0
    %485 = vmatprep.subr.mxu0 0.0
    %486 = vmatpush1.msra.mxu0 0.0
    %487 = vmatprep.subr.mxu0 0.0
    %488 = vmatpush1.msra.mxu0 0.0
    %489 = vmatprep.subr.mxu0 0.0
    %490 = vmatpush1.msra.mxu0 0.0
    %491 = vmatprep.subr.mxu0 0.0
    %492 = vmatpush1.msra.mxu0 0.0
    %493 = vmatprep.subr.mxu0 0.0
    %494 = vmatpush1.msra.mxu0 0.0
    %495 = vmatprep.subr.mxu0 0.0
    %496 = vmatpush1.msra.mxu0 0.0
    %497 = vmatprep.subr.mxu0 0.0
    %498 = vmatpush1.msra.mxu0 0.0
    %499 = vmatprep.subr.mxu0 0.0
    %500 = vmatpush1.msra.mxu0 0.0
    %501 = vmatprep.subr.mxu0 0.0
    %502 = vmatpush1.msra.mxu0 0.0
    %503 = vmatprep.subr.mxu0 0.0
    %504 = vmatpush1.msra.mxu0 0.0
    %505 = vmatprep.subr.mxu0 0.0
    %506 = vmatpush1.msra.mxu0 0.0
    %507 = vmatprep.subr.mxu0 0.0
    %508 = vmatpush1.msra.mxu0 0.0
    %509 = vmatprep.subr.mxu0 0.0
    %510 = vmatpush1.msra.mxu0 0.0
    %511 = vmatprep.subr.mxu0 0.0
    %512 = vmatpush1.msra.mxu0 0.0
    %513 = vmatprep.subr.mxu0 0.0
    %514 = vmatpush1.msra.mxu0 0.0
    %515 = vmatprep.subr.mxu0 0.0
    %516 = vmatpush1.msra.mxu0 0.0
    %517 = vmatprep.subr.mxu0 0.0
    %518 = vmatpush1.msra.mxu0 0.0
    %519 = vmatprep.subr.mxu0 0.0
    %520 = vmatpush1.msra.mxu0 0.0
    %521 = vmatprep.subr.mxu0 0.0
    %522 = vmatpush1.msra.mxu0 0.0
    %523 = vmatprep.subr.mxu0 0.0
    %524 = vmatpush1.msra.mxu0 0.0
    %525 = vmatprep.subr.mxu0 0.0
    %526 = vmatpush1.msra.mxu0 0.0
    %527 = vmatprep.subr.mxu0 0.0
    %528 = vmatpush1.msra.mxu0 0.0
    %529 = vmatprep.subr.mxu0 0.0
    %530 = vmatpush1.msra.mxu0 0.0
    %531 = vmatprep.subr.mxu0 0.0
    %532 = vmatpush1.msra.mxu0 0.0
    %533 = vmatprep.mubr.f32.mxu0 0.0
    %534 = vmatmul.mubr.f32.gmra.mrb[0].mxu0 %v265
    %v535 = vpop.f32.mrb[0].mxu0
    %v536 = vadd.f32 0.0, %v535
    %v537 = vpop.f32.mrb[0].mxu0
    %538 = vdwg.mxu0
    %v539 = vadd.f32 %v356, %v465
    %v540 = vadd.f32 %v539, %v103
    %v541 = vmax.f32 %v536, 1e-30
    %v542 = vlog2.pop %v541
    %v543 = vmul.f32 %v542, 0.6931472
    %v544 = vadd.f32 %v540, %v543
    %vm545 = vcmp.ne.f32.partialorder %v358, 0.0
    %v546 = vsel %vm545, 1, 0
    %v547 = vlaneseq
    %v548 = vshrl.u32 %v547, 7
    %v549 = vsub.s32 0, %v548
    %v550 = vrot.slane %v546, %v549
    %vm551 = vcmp.eq.s32.totalorder %v550, 1
    %v552 = vsel %vm551, %v544, %v351
    %v553 = vsel %vm454, %v351, %v552
    %v554 = vsel %vm551, %v365, %v352
    %s555 = sadd.s32 %s96, 2
    %p556 = scmp.eq.s32.totalorder %s555, 0
    %s557 = scalar_lea.vmem [#allocation6], 16
    %v558 = vld [vmem:[%s557] sm:$0xff]
    %v559 = vld [vmem:[#allocation9 + $0x2] sm:$0x1]
    %v560 = vld [vmem:[#allocation11 + $0x2] sm:$0x1]
    %v561 = vlaneseq
    %v562 = vshrl.u32 %v561, 7
    %v563 = vsub.s32 0, %v562
    %v564 = vrot.slane %v559, %v563
    %vm565 = vcmp.eq.s32.totalorder %v108, %v564
    %v566 = vsel %vm565, 1, 0
    %v567 = vcvt.s32.f32 %v566
    %v568 = vmul.f32 %v558, %v567
    %v569 = vsel %vm158, %v568, 0.0
    %v570 = vrot.slane %v569, 4
    %v571 = vadd.f32 %v569, %v570
    %v572 = vrot.slane %v571, 2
    %v573 = vadd.f32 %v571, %v572
    %v574 = vrot.slane %v573, 1
    %v575 = vadd.f32 %v573, %v574
    %576 = vmatprep.subr.mxu0 0.0
    %577 = vmatpush1.msra.mxu0 %v365
    %578 = vmatprep.subr.mxu0 0.0
    %579 = vmatpush1.msra.mxu0 0.0
    %580 = vmatprep.subr.mxu0 0.0
    %581 = vmatpush1.msra.mxu0 0.0
    %582 = vmatprep.subr.mxu0 0.0
    %583 = vmatpush1.msra.mxu0 0.0
    %584 = vmatprep.subr.mxu0 0.0
    %585 = vmatpush1.msra.mxu0 0.0
    %586 = vmatprep.subr.mxu0 0.0
    %587 = vmatpush1.msra.mxu0 0.0
    %588 = vmatprep.subr.mxu0 0.0
    %589 = vmatpush1.msra.mxu0 0.0
    %590 = vmatprep.subr.mxu0 0.0
    %591 = vmatpush1.msra.mxu0 0.0
    %592 = vmatprep.subr.mxu0 0.0
    %593 = vmatpush1.msra.mxu0 0.0
    %594 = vmatprep.subr.mxu0 0.0
    %595 = vmatpush1.msra.mxu0 0.0
    %596 = vmatprep.subr.mxu0 0.0
    %597 = vmatpush1.msra.mxu0 0.0
    %598 = vmatprep.subr.mxu0 0.0
    %599 = vmatpush1.msra.mxu0 0.0
    %600 = vmatprep.subr.mxu0 0.0
    %601 = vmatpush1.msra.mxu0 0.0
    %602 = vmatprep.subr.mxu0 0.0
    %603 = vmatpush1.msra.mxu0 0.0
    %604 = vmatprep.subr.mxu0 0.0
    %605 = vmatpush1.msra.mxu0 0.0
    %606 = vmatprep.subr.mxu0 0.0
    %607 = vmatpush1.msra.mxu0 0.0
    %608 = vmatprep.subr.mxu0 0.0
    %609 = vmatpush1.msra.mxu0 0.0
    %610 = vmatprep.subr.mxu0 0.0
    %611 = vmatpush1.msra.mxu0 0.0
    %612 = vmatprep.subr.mxu0 0.0
    %613 = vmatpush1.msra.mxu0 0.0
    %614 = vmatprep.subr.mxu0 0.0
    %615 = vmatpush1.msra.mxu0 0.0
    %616 = vmatprep.subr.mxu0 0.0
    %617 = vmatpush1.msra.mxu0 0.0
    %618 = vmatprep.subr.mxu0 0.0
    %619 = vmatpush1.msra.mxu0 0.0
    %620 = vmatprep.subr.mxu0 0.0
    %621 = vmatpush1.msra.mxu0 0.0
    %622 = vmatprep.subr.mxu0 0.0
    %623 = vmatpush1.msra.mxu0 0.0
    %624 = vmatprep.subr.mxu0 0.0
    %625 = vmatpush1.msra.mxu0 0.0
    %626 = vmatprep.subr.mxu0 0.0
    %627 = vmatpush1.msra.mxu0 0.0
    %628 = vmatprep.subr.mxu0 0.0
    %629 = vmatpush1.msra.mxu0 0.0
    %630 = vmatprep.subr.mxu0 0.0
    %631 = vmatpush1.msra.mxu0 0.0
    %632 = vmatprep.subr.mxu0 0.0
    %633 = vmatpush1.msra.mxu0 0.0
    %634 = vmatprep.subr.mxu0 0.0
    %635 = vmatpush1.msra.mxu0 0.0
    %636 = vmatprep.subr.mxu0 0.0
    %637 = vmatpush1.msra.mxu0 0.0
    %638 = vmatprep.subr.mxu0 0.0
    %639 = vmatpush1.msra.mxu0 0.0
    %640 = vmatprep.mubr.f32.mxu0 0.0
    %641 = vmatmul.mubr.f32.gmra.mrb[0].mxu0 %v167
    %v642 = vpop.f32.mrb[0].mxu0
    %v643 = vadd.f32 0.0, %v642
    %v644 = vpop.f32.mrb[0].mxu0
    %645 = vdwg.mxu0
    %v646 = vmul.f32 %v643, %v567
    %v647 = vsel %vm158, %v646, 0.0
    %v648 = vrot.slane %v647, 4
    %v649 = vadd.f32 %v647, %v648
    %v650 = vrot.slane %v649, 2
    %v651 = vadd.f32 %v649, %v650
    %v652 = vrot.slane %v651, 1
    %v653 = vadd.f32 %v651, %v652
    %s654 = scalar_select %p556, 1, 0
    %v655 = vstv %s654
    %vm656 = vcmp.eq.s32.totalorder %v655, 1
    %v657 = vsel %vm656, 0.0, %v653
    %v658 = vadd.f32 %v575, %v657
    %v659 = vmul.f32 %v658, %v560
    %v660 = vadd.f32 %v458, %v659
    %v661 = vsel %vm158, %v553, -inf
    %v662 = vrot.slane %v661, 4
    %v663 = vmax.f32 %v661, %v662
    %v664 = vrot.slane %v663, 2
    %v665 = vmax.f32 %v663, %v664
    %v666 = vrot.slane %v665, 1
    %v667 = vmax.f32 %v665, %v666
    %v668 = vsub.f32 %v553, %v667
    %v669 = vmul.f32 %v668, 1.442695
    %v670 = vpow.pop %v669
    %671 = vmatprep.subr.mxu0 0.0
    %672 = vmatpush1.msra.mxu0 %v670
    %673 = vmatprep.subr.mxu0 0.0
    %674 = vmatpush1.msra.mxu0 0.0
    %675 = vmatprep.subr.mxu0 0.0
    %676 = vmatpush1.msra.mxu0 0.0
    %677 = vmatprep.subr.mxu0 0.0
    %678 = vmatpush1.msra.mxu0 0.0
    %679 = vmatprep.subr.mxu0 0.0
    %680 = vmatpush1.msra.mxu0 0.0
    %681 = vmatprep.subr.mxu0 0.0
    %682 = vmatpush1.msra.mxu0 0.0
    %683 = vmatprep.subr.mxu0 0.0
    %684 = vmatpush1.msra.mxu0 0.0
    %685 = vmatprep.subr.mxu0 0.0
    %686 = vmatpush1.msra.mxu0 0.0
    %687 = vmatprep.subr.mxu0 0.0
    %688 = vmatpush1.msra.mxu0 0.0
    %689 = vmatprep.subr.mxu0 0.0
    %690 = vmatpush1.msra.mxu0 0.0
    %691 = vmatprep.subr.mxu0 0.0
    %692 = vmatpush1.msra.mxu0 0.0
    %693 = vmatprep.subr.mxu0 0.0
    %694 = vmatpush1.msra.mxu0 0.0
    %695 = vmatprep.subr.mxu0 0.0
    %696 = vmatpush1.msra.mxu0 0.0
    %697 = vmatprep.subr.mxu0 0.0
    %698 = vmatpush1.msra.mxu0 0.0
    %699 = vmatprep.subr.mxu0 0.0
    %700 = vmatpush1.msra.mxu0 0.0
    %701 = vmatprep.subr.mxu0 0.0
    %702 = vmatpush1.msra.mxu0 0.0
    %703 = vmatprep.subr.mxu0 0.0
    %704 = vmatpush1.msra.mxu0 0.0
    %705 = vmatprep.subr.mxu0 0.0
    %706 = vmatpush1.msra.mxu0 0.0
    %707 = vmatprep.subr.mxu0 0.0
    %708 = vmatpush1.msra.mxu0 0.0
    %709 = vmatprep.subr.mxu0 0.0
    %710 = vmatpush1.msra.mxu0 0.0
    %711 = vmatprep.subr.mxu0 0.0
    %712 = vmatpush1.msra.mxu0 0.0
    %713 = vmatprep.subr.mxu0 0.0
    %714 = vmatpush1.msra.mxu0 0.0
    %715 = vmatprep.subr.mxu0 0.0
    %716 = vmatpush1.msra.mxu0 0.0
    %717 = vmatprep.subr.mxu0 0.0
    %718 = vmatpush1.msra.mxu0 0.0
    %719 = vmatprep.subr.mxu0 0.0
    %720 = vmatpush1.msra.mxu0 0.0
    %721 = vmatprep.subr.mxu0 0.0
    %722 = vmatpush1.msra.mxu0 0.0
    %723 = vmatprep.subr.mxu0 0.0
    %724 = vmatpush1.msra.mxu0 0.0
    %725 = vmatprep.subr.mxu0 0.0
    %726 = vmatpush1.msra.mxu0 0.0
    %727 = vmatprep.subr.mxu0 0.0
    %728 = vmatpush1.msra.mxu0 0.0
    %729 = vmatprep.subr.mxu0 0.0
    %730 = vmatpush1.msra.mxu0 0.0
    %731 = vmatprep.subr.mxu0 0.0
    %732 = vmatpush1.msra.mxu0 0.0
    %733 = vmatprep.subr.mxu0 0.0
    %734 = vmatpush1.msra.mxu0 0.0
    %735 = vmatprep.mubr.f32.mxu0 0.0
    %736 = vmatmul.mubr.f32.gmra.mrb[0].mxu0 %v265
    %v737 = vpop.f32.mrb[0].mxu0
    %v738 = vadd.f32 0.0, %v737
    %v739 = vpop.f32.mrb[0].mxu0
    %740 = vdwg.mxu0
    %v741 = vadd.f32 %v558, %v667
    %v742 = vadd.f32 %v741, %v103
    %v743 = vmax.f32 %v738, 1e-30
    %v744 = vlog2.pop %v743
    %v745 = vmul.f32 %v744, 0.6931472
    %v746 = vadd.f32 %v742, %v745
    %vm747 = vcmp.ne.f32.partialorder %v560, 0.0
    %v748 = vsel %vm747, 1, 0
    %v749 = vlaneseq
    %v750 = vshrl.u32 %v749, 7
    %v751 = vsub.s32 0, %v750
    %v752 = vrot.slane %v748, %v751
    %vm753 = vcmp.eq.s32.totalorder %v752, 1
    %v754 = vsel %vm753, %v746, %v553
    %v755 = vsel %vm656, %v553, %v754
    %v756 = vsel %vm753, %v567, %v554
    %s757 = sadd.s32 %s96, 3
    %p758 = scmp.eq.s32.totalorder %s757, 0
    %s759 = scalar_lea.vmem [#allocation6], 24
    %v760 = vld [vmem:[%s759] sm:$0xff]
    %v761 = vld [vmem:[#allocation9 + $0x3] sm:$0x1]
    %v762 = vld [vmem:[#allocation11 + $0x3] sm:$0x1]
    %v763 = vlaneseq
    %v764 = vshrl.u32 %v763, 7
    %v765 = vsub.s32 0, %v764
    %v766 = vrot.slane %v761, %v765
    %vm767 = vcmp.eq.s32.totalorder %v108, %v766
    %v768 = vsel %vm767, 1, 0
    %v769 = vcvt.s32.f32 %v768
    %v770 = vmul.f32 %v760, %v769
    %v771 = vsel %vm158, %v770, 0.0
    %v772 = vrot.slane %v771, 4
    %v773 = vadd.f32 %v771, %v772
    %v774 = vrot.slane %v773, 2
    %v775 = vadd.f32 %v773, %v774
    %v776 = vrot.slane %v775, 1
    %v777 = vadd.f32 %v775, %v776
    %778 = vmatprep.subr.mxu0 0.0
    %779 = vmatpush1.msra.mxu0 %v567
    %780 = vmatprep.subr.mxu0 0.0
    %781 = vmatpush1.msra.mxu0 0.0
    %782 = vmatprep.subr.mxu0 0.0
    %783 = vmatpush1.msra.mxu0 0.0
    %784 = vmatprep.subr.mxu0 0.0
    %785 = vmatpush1.msra.mxu0 0.0
    %786 = vmatprep.subr.mxu0 0.0
    %787 = vmatpush1.msra.mxu0 0.0
    %788 = vmatprep.subr.mxu0 0.0
    %789 = vmatpush1.msra.mxu0 0.0
    %790 = vmatprep.subr.mxu0 0.0
    %791 = vmatpush1.msra.mxu0 0.0
    %792 = vmatprep.subr.mxu0 0.0
    %793 = vmatpush1.msra.mxu0 0.0
    %794 = vmatprep.subr.mxu0 0.0
    %795 = vmatpush1.msra.mxu0 0.0
    %796 = vmatprep.subr.mxu0 0.0
    %797 = vmatpush1.msra.mxu0 0.0
    %798 = vmatprep.subr.mxu0 0.0
    %799 = vmatpush1.msra.mxu0 0.0
    %800 = vmatprep.subr.mxu0 0.0
    %801 = vmatpush1.msra.mxu0 0.0
    %802 = vmatprep.subr.mxu0 0.0
    %803 = vmatpush1.msra.mxu0 0.0
    %804 = vmatprep.subr.mxu0 0.0
    %805 = vmatpush1.msra.mxu0 0.0
    %806 = vmatprep.subr.mxu0 0.0
    %807 = vmatpush1.msra.mxu0 0.0
    %808 = vmatprep.subr.mxu0 0.0
    %809 = vmatpush1.msra.mxu0 0.0
    %810 = vmatprep.subr.mxu0 0.0
    %811 = vmatpush1.msra.mxu0 0.0
    %812 = vmatprep.subr.mxu0 0.0
    %813 = vmatpush1.msra.mxu0 0.0
    %814 = vmatprep.subr.mxu0 0.0
    %815 = vmatpush1.msra.mxu0 0.0
    %816 = vmatprep.subr.mxu0 0.0
    %817 = vmatpush1.msra.mxu0 0.0
    %818 = vmatprep.subr.mxu0 0.0
    %819 = vmatpush1.msra.mxu0 0.0
    %820 = vmatprep.subr.mxu0 0.0
    %821 = vmatpush1.msra.mxu0 0.0
    %822 = vmatprep.subr.mxu0 0.0
    %823 = vmatpush1.msra.mxu0 0.0
    %824 = vmatprep.subr.mxu0 0.0
    %825 = vmatpush1.msra.mxu0 0.0
    %826 = vmatprep.subr.mxu0 0.0
    %827 = vmatpush1.msra.mxu0 0.0
    %828 = vmatprep.subr.mxu0 0.0
    %829 = vmatpush1.msra.mxu0 0.0
    %830 = vmatprep.subr.mxu0 0.0
    %831 = vmatpush1.msra.mxu0 0.0
    %832 = vmatprep.subr.mxu0 0.0
    %833 = vmatpush1.msra.mxu0 0.0
    %834 = vmatprep.subr.mxu0 0.0
    %835 = vmatpush1.msra.mxu0 0.0
    %836 = vmatprep.subr.mxu0 0.0
    %837 = vmatpush1.msra.mxu0 0.0
    %838 = vmatprep.subr.mxu0 0.0
    %839 = vmatpush1.msra.mxu0 0.0
    %840 = vmatprep.subr.mxu0 0.0
    %841 = vmatpush1.msra.mxu0 0.0
    %842 = vmatprep.mubr.f32.mxu0 0.0
    %843 = vmatmul.mubr.f32.gmra.mrb[0].mxu0 %v167
    %v844 = vpop.f32.mrb[0].mxu0
    %v845 = vadd.f32 0.0, %v844
    %v846 = vpop.f32.mrb[0].mxu0
    %847 = vdwg.mxu0
    %v848 = vmul.f32 %v845, %v769
    %v849 = vsel %vm158, %v848, 0.0
    %v850 = vrot.slane %v849, 4
    %v851 = vadd.f32 %v849, %v850
    %v852 = vrot.slane %v851, 2
    %v853 = vadd.f32 %v851, %v852
    %v854 = vrot.slane %v853, 1
    %v855 = vadd.f32 %v853, %v854
    %s856 = scalar_select %p758, 1, 0
    %v857 = vstv %s856
    %vm858 = vcmp.eq.s32.totalorder %v857, 1
    %v859 = vsel %vm858, 0.0, %v855
    %v860 = vadd.f32 %v777, %v859
    %v861 = vmul.f32 %v860, %v762
    %v862 = vadd.f32 %v660, %v861
    %v863 = vsel %vm158, %v755, -inf
    %v864 = vrot.slane %v863, 4
    %v865 = vmax.f32 %v863, %v864
    %v866 = vrot.slane %v865, 2
    %v867 = vmax.f32 %v865, %v866
    %v868 = vrot.slane %v867, 1
    %v869 = vmax.f32 %v867, %v868
    %v870 = vsub.f32 %v755, %v869
    %v871 = vmul.f32 %v870, 1.442695
    %v872 = vpow.pop %v871
    %873 = vmatprep.subr.mxu0 0.0
    %874 = vmatpush1.msra.mxu0 %v872
    %875 = vmatprep.subr.mxu0 0.0
    %876 = vmatpush1.msra.mxu0 0.0
    %877 = vmatprep.subr.mxu0 0.0
    %878 = vmatpush1.msra.mxu0 0.0
    %879 = vmatprep.subr.mxu0 0.0
    %880 = vmatpush1.msra.mxu0 0.0
    %881 = vmatprep.subr.mxu0 0.0
    %882 = vmatpush1.msra.mxu0 0.0
    %883 = vmatprep.subr.mxu0 0.0
    %884 = vmatpush1.msra.mxu0 0.0
    %885 = vmatprep.subr.mxu0 0.0
    %886 = vmatpush1.msra.mxu0 0.0
    %887 = vmatprep.subr.mxu0 0.0
    %888 = vmatpush1.msra.mxu0 0.0
    %889 = vmatprep.subr.mxu0 0.0
    %890 = vmatpush1.msra.mxu0 0.0
    %891 = vmatprep.subr.mxu0 0.0
    %892 = vmatpush1.msra.mxu0 0.0
    %893 = vmatprep.subr.mxu0 0.0
    %894 = vmatpush1.msra.mxu0 0.0
    %895 = vmatprep.subr.mxu0 0.0
    %896 = vmatpush1.msra.mxu0 0.0
    %897 = vmatprep.subr.mxu0 0.0
    %898 = vmatpush1.msra.mxu0 0.0
    %899 = vmatprep.subr.mxu0 0.0
    %900 = vmatpush1.msra.mxu0 0.0
    %901 = vmatprep.subr.mxu0 0.0
    %902 = vmatpush1.msra.mxu0 0.0
    %903 = vmatprep.subr.mxu0 0.0
    %904 = vmatpush1.msra.mxu0 0.0
    %905 = vmatprep.subr.mxu0 0.0
    %906 = vmatpush1.msra.mxu0 0.0
    %907 = vmatprep.subr.mxu0 0.0
    %908 = vmatpush1.msra.mxu0 0.0
    %909 = vmatprep.subr.mxu0 0.0
    %910 = vmatpush1.msra.mxu0 0.0
    %911 = vmatprep.subr.mxu0 0.0
    %912 = vmatpush1.msra.mxu0 0.0
    %913 = vmatprep.subr.mxu0 0.0
    %914 = vmatpush1.msra.mxu0 0.0
    %915 = vmatprep.subr.mxu0 0.0
    %916 = vmatpush1.msra.mxu0 0.0
    %917 = vmatprep.subr.mxu0 0.0
    %918 = vmatpush1.msra.mxu0 0.0
    %919 = vmatprep.subr.mxu0 0.0
    %920 = vmatpush1.msra.mxu0 0.0
    %921 = vmatprep.subr.mxu0 0.0
    %922 = vmatpush1.msra.mxu0 0.0
    %923 = vmatprep.subr.mxu0 0.0
    %924 = vmatpush1.msra.mxu0 0.0
    %925 = vmatprep.subr.mxu0 0.0
    %926 = vmatpush1.msra.mxu0 0.0
    %927 = vmatprep.subr.mxu0 0.0
    %928 = vmatpush1.msra.mxu0 0.0
    %929 = vmatprep.subr.mxu0 0.0
    %930 = vmatpush1.msra.mxu0 0.0
    %931 = vmatprep.subr.mxu0 0.0
    %932 = vmatpush1.msra.mxu0 0.0
    %933 = vmatprep.subr.mxu0 0.0
    %934 = vmatpush1.msra.mxu0 0.0
    %935 = vmatprep.subr.mxu0 0.0
    %936 = vmatpush1.msra.mxu0 0.0
    %937 = vmatprep.mubr.f32.mxu0 0.0
    %938 = vmatmul.mubr.f32.gmra.mrb[0].mxu0 %v265
    %v939 = vpop.f32.mrb[0].mxu0
    %v940 = vadd.f32 0.0, %v939
    %v941 = vpop.f32.mrb[0].mxu0
    %942 = vdwg.mxu0
    %v943 = vadd.f32 %v760, %v869
    %v944 = vadd.f32 %v943, %v103
    %v945 = vmax.f32 %v940, 1e-30
    %v946 = vlog2.pop %v945
    %v947 = vmul.f32 %v946, 0.6931472
    %v948 = vadd.f32 %v944, %v947
    %vm949 = vcmp.ne.f32.partialorder %v762, 0.0
    %v950 = vsel %vm949, 1, 0
    %v951 = vlaneseq
    %v952 = vshrl.u32 %v951, 7
    %v953 = vsub.s32 0, %v952
    %v954 = vrot.slane %v950, %v953
    %vm955 = vcmp.eq.s32.totalorder %v954, 1
    %v956 = vsel %vm955, %v948, %v755
    %v957 = vsel %vm858, %v755, %v956
    %v958 = vsel %vm955, %v769, %v756
    %s959 = sadd.s32 %s96, 4
    %p960 = scmp.eq.s32.totalorder %s959, 0
    %s961 = scalar_lea.vmem [#allocation6], 32
    %v962 = vld [vmem:[%s961] sm:$0xff]
    %v963 = vld [vmem:[#allocation9 + $0x4] sm:$0x1]
    %v964 = vld [vmem:[#allocation11 + $0x4] sm:$0x1]
    %v965 = vlaneseq
    %v966 = vshrl.u32 %v965, 7
    %v967 = vsub.s32 0, %v966
    %v968 = vrot.slane %v963, %v967
    %vm969 = vcmp.eq.s32.totalorder %v108, %v968
    %v970 = vsel %vm969, 1, 0
    %v971 = vcvt.s32.f32 %v970
    %v972 = vmul.f32 %v962, %v971
    %v973 = vsel %vm158, %v972, 0.0
    %v974 = vrot.slane %v973, 4
    %v975 = vadd.f32 %v973, %v974
    %v976 = vrot.slane %v975, 2
    %v977 = vadd.f32 %v975, %v976
    %v978 = vrot.slane %v977, 1
    %v979 = vadd.f32 %v977, %v978
    %980 = vmatprep.subr.mxu0 0.0
    %981 = vmatpush1.msra.mxu0 %v769
    %982 = vmatprep.subr.mxu0 0.0
    %983 = vmatpush1.msra.mxu0 0.0
    %984 = vmatprep.subr.mxu0 0.0
    %985 = vmatpush1.msra.mxu0 0.0
    %986 = vmatprep.subr.mxu0 0.0
    %987 = vmatpush1.msra.mxu0 0.0
    %988 = vmatprep.subr.mxu0 0.0
    %989 = vmatpush1.msra.mxu0 0.0
    %990 = vmatprep.subr.mxu0 0.0
    %991 = vmatpush1.msra.mxu0 0.0
    %992 = vmatprep.subr.mxu0 0.0
    %993 = vmatpush1.msra.mxu0 0.0
    %994 = vmatprep.subr.mxu0 0.0
    %995 = vmatpush1.msra.mxu0 0.0
    %996 = vmatprep.subr.mxu0 0.0
    %997 = vmatpush1.msra.mxu0 0.0
    %998 = vmatprep.subr.mxu0 0.0
    %999 = vmatpush1.msra.mxu0 0.0
    %1000 = vmatprep.subr.mxu0 0.0
    %1001 = vmatpush1.msra.mxu0 0.0
    %1002 = vmatprep.subr.mxu0 0.0
    %1003 = vmatpush1.msra.mxu0 0.0
    %1004 = vmatprep.subr.mxu0 0.0
    %1005 = vmatpush1.msra.mxu0 0.0
    %1006 = vmatprep.subr.mxu0 0.0
    %1007 = vmatpush1.msra.mxu0 0.0
    %1008 = vmatprep.subr.mxu0 0.0
    %1009 = vmatpush1.msra.mxu0 0.0
    %1010 = vmatprep.subr.mxu0 0.0
    %1011 = vmatpush1.msra.mxu0 0.0
    %1012 = vmatprep.subr.mxu0 0.0
    %1013 = vmatpush1.msra.mxu0 0.0
    %1014 = vmatprep.subr.mxu0 0.0
    %1015 = vmatpush1.msra.mxu0 0.0
    %1016 = vmatprep.subr.mxu0 0.0
    %1017 = vmatpush1.msra.mxu0 0.0
    %1018 = vmatprep.subr.mxu0 0.0
    %1019 = vmatpush1.msra.mxu0 0.0
    %1020 = vmatprep.subr.mxu0 0.0
    %1021 = vmatpush1.msra.mxu0 0.0
    %1022 = vmatprep.subr.mxu0 0.0
    %1023 = vmatpush1.msra.mxu0 0.0
    %1024 = vmatprep.subr.mxu0 0.0
    %1025 = vmatpush1.msra.mxu0 0.0
    %1026 = vmatprep.subr.mxu0 0.0
    %1027 = vmatpush1.msra.mxu0 0.0
    %1028 = vmatprep.subr.mxu0 0.0
    %1029 = vmatpush1.msra.mxu0 0.0
    %1030 = vmatprep.subr.mxu0 0.0
    %1031 = vmatpush1.msra.mxu0 0.0
    %1032 = vmatprep.subr.mxu0 0.0
    %1033 = vmatpush1.msra.mxu0 0.0
    %1034 = vmatprep.subr.mxu0 0.0
    %1035 = vmatpush1.msra.mxu0 0.0
    %1036 = vmatprep.subr.mxu0 0.0
    %1037 = vmatpush1.msra.mxu0 0.0
    %1038 = vmatprep.subr.mxu0 0.0
    %1039 = vmatpush1.msra.mxu0 0.0
    %1040 = vmatprep.subr.mxu0 0.0
    %1041 = vmatpush1.msra.mxu0 0.0
    %1042 = vmatprep.subr.mxu0 0.0
    %1043 = vmatpush1.msra.mxu0 0.0
    %1044 = vmatprep.mubr.f32.mxu0 0.0
    %1045 = vmatmul.mubr.f32.gmra.mrb[0].mxu0 %v167
    %v1046 = vpop.f32.mrb[0].mxu0
    %v1047 = vadd.f32 0.0, %v1046
    %v1048 = vpop.f32.mrb[0].mxu0
    %1049 = vdwg.mxu0
    %v1050 = vmul.f32 %v1047, %v971
    %v1051 = vsel %vm158, %v1050, 0.0
    %v1052 = vrot.slane %v1051, 4
    %v1053 = vadd.f32 %v1051, %v1052
    %v1054 = vrot.slane %v1053, 2
    %v1055 = vadd.f32 %v1053, %v1054
    %v1056 = vrot.slane %v1055, 1
    %v1057 = vadd.f32 %v1055, %v1056
    %s1058 = scalar_select %p960, 1, 0
    %v1059 = vstv %s1058
    %vm1060 = vcmp.eq.s32.totalorder %v1059, 1
    %v1061 = vsel %vm1060, 0.0, %v1057
    %v1062 = vadd.f32 %v979, %v1061
    %v1063 = vmul.f32 %v1062, %v964
    %v1064 = vadd.f32 %v862, %v1063
    %v1065 = vsel %vm158, %v957, -inf
    %v1066 = vrot.slane %v1065, 4
    %v1067 = vmax.f32 %v1065, %v1066
    %v1068 = vrot.slane %v1067, 2
    %v1069 = vmax.f32 %v1067, %v1068
    %v1070 = vrot.slane %v1069, 1
    %v1071 = vmax.f32 %v1069, %v1070
    %v1072 = vsub.f32 %v957, %v1071
    %v1073 = vmul.f32 %v1072, 1.442695
    %v1074 = vpow.pop %v1073
    %1075 = vmatprep.subr.mxu0 0.0
    %1076 = vmatpush1.msra.mxu0 %v1074
    %1077 = vmatprep.subr.mxu0 0.0
    %1078 = vmatpush1.msra.mxu0 0.0
    %1079 = vmatprep.subr.mxu0 0.0
    %1080 = vmatpush1.msra.mxu0 0.0
    %1081 = vmatprep.subr.mxu0 0.0
    %1082 = vmatpush1.msra.mxu0 0.0
    %1083 = vmatprep.subr.mxu0 0.0
    %1084 = vmatpush1.msra.mxu0 0.0
    %1085 = vmatprep.subr.mxu0 0.0
    %1086 = vmatpush1.msra.mxu0 0.0
    %1087 = vmatprep.subr.mxu0 0.0
    %1088 = vmatpush1.msra.mxu0 0.0
    %1089 = vmatprep.subr.mxu0 0.0
    %1090 = vmatpush1.msra.mxu0 0.0
    %1091 = vmatprep.subr.mxu0 0.0
    %1092 = vmatpush1.msra.mxu0 0.0
    %1093 = vmatprep.subr.mxu0 0.0
    %1094 = vmatpush1.msra.mxu0 0.0
    %1095 = vmatprep.subr.mxu0 0.0
    %1096 = vmatpush1.msra.mxu0 0.0
    %1097 = vmatprep.subr.mxu0 0.0
    %1098 = vmatpush1.msra.mxu0 0.0
    %1099 = vmatprep.subr.mxu0 0.0
    %1100 = vmatpush1.msra.mxu0 0.0
    %1101 = vmatprep.subr.mxu0 0.0
    %1102 = vmatpush1.msra.mxu0 0.0
    %1103 = vmatprep.subr.mxu0 0.0
    %1104 = vmatpush1.msra.mxu0 0.0
    %1105 = vmatprep.subr.mxu0 0.0
    %1106 = vmatpush1.msra.mxu0 0.0
    %1107 = vmatprep.subr.mxu0 0.0
    %1108 = vmatpush1.msra.mxu0 0.0
    %1109 = vmatprep.subr.mxu0 0.0
    %1110 = vmatpush1.msra.mxu0 0.0
    %1111 = vmatprep.subr.mxu0 0.0
    %1112 = vmatpush1.msra.mxu0 0.0
    %1113 = vmatprep.subr.mxu0 0.0
    %1114 = vmatpush1.msra.mxu0 0.0
    %1115 = vmatprep.subr.mxu0 0.0
    %1116 = vmatpush1.msra.mxu0 0.0
    %1117 = vmatprep.subr.mxu0 0.0
    %1118 = vmatpush1.msra.mxu0 0.0
    %1119 = vmatprep.subr.mxu0 0.0
    %1120 = vmatpush1.msra.mxu0 0.0
    %1121 = vmatprep.subr.mxu0 0.0
    %1122 = vmatpush1.msra.mxu0 0.0
    %1123 = vmatprep.subr.mxu0 0.0
    %1124 = vmatpush1.msra.mxu0 0.0
    %1125 = vmatprep.subr.mxu0 0.0
    %1126 = vmatpush1.msra.mxu0 0.0
    %1127 = vmatprep.subr.mxu0 0.0
    %1128 = vmatpush1.msra.mxu0 0.0
    %1129 = vmatprep.subr.mxu0 0.0
    %1130 = vmatpush1.msra.mxu0 0.0
    %1131 = vmatprep.subr.mxu0 0.0
    %1132 = vmatpush1.msra.mxu0 0.0
    %1133 = vmatprep.subr.mxu0 0.0
    %1134 = vmatpush1.msra.mxu0 0.0
    %1135 = vmatprep.subr.mxu0 0.0
    %1136 = vmatpush1.msra.mxu0 0.0
    %1137 = vmatprep.subr.mxu0 0.0
    %1138 = vmatpush1.msra.mxu0 0.0
    %1139 = vmatprep.mubr.f32.mxu0 0.0
    %1140 = vmatmul.mubr.f32.gmra.mrb[0].mxu0 %v265
    %v1141 = vpop.f32.mrb[0].mxu0
    %v1142 = vadd.f32 0.0, %v1141
    %v1143 = vpop.f32.mrb[0].mxu0
    %1144 = vdwg.mxu0
    %v1145 = vadd.f32 %v962, %v1071
    %v1146 = vadd.f32 %v1145, %v103
    %v1147 = vmax.f32 %v1142, 1e-30
    %v1148 = vlog2.pop %v1147
    %v1149 = vmul.f32 %v1148, 0.6931472
    %v1150 = vadd.f32 %v1146, %v1149
    %vm1151 = vcmp.ne.f32.partialorder %v964, 0.0
    %v1152 = vsel %vm1151, 1, 0
    %v1153 = vlaneseq
    %v1154 = vshrl.u32 %v1153, 7
    %v1155 = vsub.s32 0, %v1154
    %v1156 = vrot.slane %v1152, %v1155
    %vm1157 = vcmp.eq.s32.totalorder %v1156, 1
    %v1158 = vsel %vm1157, %v1150, %v957
    %v1159 = vsel %vm1060, %v957, %v1158
    %v1160 = vsel %vm1157, %v971, %v958
    %s1161 = sadd.s32 %s96, 5
    %p1162 = scmp.eq.s32.totalorder %s1161, 0
    %s1163 = scalar_lea.vmem [#allocation6], 40
    %v1164 = vld [vmem:[%s1163] sm:$0xff]
    %v1165 = vld [vmem:[#allocation9 + $0x5] sm:$0x1]
    %v1166 = vld [vmem:[#allocation11 + $0x5] sm:$0x1]
    %v1167 = vlaneseq
    %v1168 = vshrl.u32 %v1167, 7
    %v1169 = vsub.s32 0, %v1168
    %v1170 = vrot.slane %v1165, %v1169
    %vm1171 = vcmp.eq.s32.totalorder %v108, %v1170
    %v1172 = vsel %vm1171, 1, 0
    %v1173 = vcvt.s32.f32 %v1172
    %v1174 = vmul.f32 %v1164, %v1173
    %v1175 = vsel %vm158, %v1174, 0.0
    %v1176 = vrot.slane %v1175, 4
    %v1177 = vadd.f32 %v1175, %v1176
    %v1178 = vrot.slane %v1177, 2
    %v1179 = vadd.f32 %v1177, %v1178
    %v1180 = vrot.slane %v1179, 1
    %v1181 = vadd.f32 %v1179, %v1180
    %1182 = vmatprep.subr.mxu0 0.0
    %1183 = vmatpush1.msra.mxu0 %v971
    %1184 = vmatprep.subr.mxu0 0.0
    %1185 = vmatpush1.msra.mxu0 0.0
    %1186 = vmatprep.subr.mxu0 0.0
    %1187 = vmatpush1.msra.mxu0 0.0
    %1188 = vmatprep.subr.mxu0 0.0
    %1189 = vmatpush1.msra.mxu0 0.0
    %1190 = vmatprep.subr.mxu0 0.0
    %1191 = vmatpush1.msra.mxu0 0.0
    %1192 = vmatprep.subr.mxu0 0.0
    %1193 = vmatpush1.msra.mxu0 0.0
    %1194 = vmatprep.subr.mxu0 0.0
    %1195 = vmatpush1.msra.mxu0 0.0
    %1196 = vmatprep.subr.mxu0 0.0
    %1197 = vmatpush1.msra.mxu0 0.0
    %1198 = vmatprep.subr.mxu0 0.0
    %1199 = vmatpush1.msra.mxu0 0.0
    %1200 = vmatprep.subr.mxu0 0.0
    %1201 = vmatpush1.msra.mxu0 0.0
    %1202 = vmatprep.subr.mxu0 0.0
    %1203 = vmatpush1.msra.mxu0 0.0
    %1204 = vmatprep.subr.mxu0 0.0
    %1205 = vmatpush1.msra.mxu0 0.0
    %1206 = vmatprep.subr.mxu0 0.0
    %1207 = vmatpush1.msra.mxu0 0.0
    %1208 = vmatprep.subr.mxu0 0.0
    %1209 = vmatpush1.msra.mxu0 0.0
    %1210 = vmatprep.subr.mxu0 0.0
    %1211 = vmatpush1.msra.mxu0 0.0
    %1212 = vmatprep.subr.mxu0 0.0
    %1213 = vmatpush1.msra.mxu0 0.0
    %1214 = vmatprep.subr.mxu0 0.0
    %1215 = vmatpush1.msra.mxu0 0.0
    %1216 = vmatprep.subr.mxu0 0.0
    %1217 = vmatpush1.msra.mxu0 0.0
    %1218 = vmatprep.subr.mxu0 0.0
    %1219 = vmatpush1.msra.mxu0 0.0
    %1220 = vmatprep.subr.mxu0 0.0
    %1221 = vmatpush1.msra.mxu0 0.0
    %1222 = vmatprep.subr.mxu0 0.0
    %1223 = vmatpush1.msra.mxu0 0.0
    %1224 = vmatprep.subr.mxu0 0.0
    %1225 = vmatpush1.msra.mxu0 0.0
    %1226 = vmatprep.subr.mxu0 0.0
    %1227 = vmatpush1.msra.mxu0 0.0
    %1228 = vmatprep.subr.mxu0 0.0
    %1229 = vmatpush1.msra.mxu0 0.0
    %1230 = vmatprep.subr.mxu0 0.0
    %1231 = vmatpush1.msra.mxu0 0.0
    %1232 = vmatprep.subr.mxu0 0.0
    %1233 = vmatpush1.msra.mxu0 0.0
    %1234 = vmatprep.subr.mxu0 0.0
    %1235 = vmatpush1.msra.mxu0 0.0
    %1236 = vmatprep.subr.mxu0 0.0
    %1237 = vmatpush1.msra.mxu0 0.0
    %1238 = vmatprep.subr.mxu0 0.0
    %1239 = vmatpush1.msra.mxu0 0.0
    %1240 = vmatprep.subr.mxu0 0.0
    %1241 = vmatpush1.msra.mxu0 0.0
    %1242 = vmatprep.subr.mxu0 0.0
    %1243 = vmatpush1.msra.mxu0 0.0
    %1244 = vmatprep.subr.mxu0 0.0
    %1245 = vmatpush1.msra.mxu0 0.0
    %1246 = vmatprep.mubr.f32.mxu0 0.0
    %1247 = vmatmul.mubr.f32.gmra.mrb[0].mxu0 %v167
    %v1248 = vpop.f32.mrb[0].mxu0
    %v1249 = vadd.f32 0.0, %v1248
    %v1250 = vpop.f32.mrb[0].mxu0
    %1251 = vdwg.mxu0
    %v1252 = vmul.f32 %v1249, %v1173
    %v1253 = vsel %vm158, %v1252, 0.0
    %v1254 = vrot.slane %v1253, 4
    %v1255 = vadd.f32 %v1253, %v1254
    %v1256 = vrot.slane %v1255, 2
    %v1257 = vadd.f32 %v1255, %v1256
    %v1258 = vrot.slane %v1257, 1
    %v1259 = vadd.f32 %v1257, %v1258
    %s1260 = scalar_select %p1162, 1, 0
    %v1261 = vstv %s1260
    %vm1262 = vcmp.eq.s32.totalorder %v1261, 1
    %v1263 = vsel %vm1262, 0.0, %v1259
    %v1264 = vadd.f32 %v1181, %v1263
    %v1265 = vmul.f32 %v1264, %v1166
    %v1266 = vadd.f32 %v1064, %v1265
    %v1267 = vsel %vm158, %v1159, -inf
    %v1268 = vrot.slane %v1267, 4
    %v1269 = vmax.f32 %v1267, %v1268
    %v1270 = vrot.slane %v1269, 2
    %v1271 = vmax.f32 %v1269, %v1270
    %v1272 = vrot.slane %v1271, 1
    %v1273 = vmax.f32 %v1271, %v1272
    %v1274 = vsub.f32 %v1159, %v1273
    %v1275 = vmul.f32 %v1274, 1.442695
    %v1276 = vpow.pop %v1275
    %1277 = vmatprep.subr.mxu0 0.0
    %1278 = vmatpush1.msra.mxu0 %v1276
    %1279 = vmatprep.subr.mxu0 0.0
    %1280 = vmatpush1.msra.mxu0 0.0
    %1281 = vmatprep.subr.mxu0 0.0
    %1282 = vmatpush1.msra.mxu0 0.0
    %1283 = vmatprep.subr.mxu0 0.0
    %1284 = vmatpush1.msra.mxu0 0.0
    %1285 = vmatprep.subr.mxu0 0.0
    %1286 = vmatpush1.msra.mxu0 0.0
    %1287 = vmatprep.subr.mxu0 0.0
    %1288 = vmatpush1.msra.mxu0 0.0
    %1289 = vmatprep.subr.mxu0 0.0
    %1290 = vmatpush1.msra.mxu0 0.0
    %1291 = vmatprep.subr.mxu0 0.0
    %1292 = vmatpush1.msra.mxu0 0.0
    %1293 = vmatprep.subr.mxu0 0.0
    %1294 = vmatpush1.msra.mxu0 0.0
    %1295 = vmatprep.subr.mxu0 0.0
    %1296 = vmatpush1.msra.mxu0 0.0
    %1297 = vmatprep.subr.mxu0 0.0
    %1298 = vmatpush1.msra.mxu0 0.0
    %1299 = vmatprep.subr.mxu0 0.0
    %1300 = vmatpush1.msra.mxu0 0.0
    %1301 = vmatprep.subr.mxu0 0.0
    %1302 = vmatpush1.msra.mxu0 0.0
    %1303 = vmatprep.subr.mxu0 0.0
    %1304 = vmatpush1.msra.mxu0 0.0
    %1305 = vmatprep.subr.mxu0 0.0
    %1306 = vmatpush1.msra.mxu0 0.0
    %1307 = vmatprep.subr.mxu0 0.0
    %1308 = vmatpush1.msra.mxu0 0.0
    %1309 = vmatprep.subr.mxu0 0.0
    %1310 = vmatpush1.msra.mxu0 0.0
    %1311 = vmatprep.subr.mxu0 0.0
    %1312 = vmatpush1.msra.mxu0 0.0
    %1313 = vmatprep.subr.mxu0 0.0
    %1314 = vmatpush1.msra.mxu0 0.0
    %1315 = vmatprep.subr.mxu0 0.0
    %1316 = vmatpush1.msra.mxu0 0.0
    %1317 = vmatprep.subr.mxu0 0.0
    %1318 = vmatpush1.msra.mxu0 0.0
    %1319 = vmatprep.subr.mxu0 0.0
    %1320 = vmatpush1.msra.mxu0 0.0
    %1321 = vmatprep.subr.mxu0 0.0
    %1322 = vmatpush1.msra.mxu0 0.0
    %1323 = vmatprep.subr.mxu0 0.0
    %1324 = vmatpush1.msra.mxu0 0.0
    %1325 = vmatprep.subr.mxu0 0.0
    %1326 = vmatpush1.msra.mxu0 0.0
    %1327 = vmatprep.subr.mxu0 0.0
    %1328 = vmatpush1.msra.mxu0 0.0
    %1329 = vmatprep.subr.mxu0 0.0
    %1330 = vmatpush1.msra.mxu0 0.0
    %1331 = vmatprep.subr.mxu0 0.0
    %1332 = vmatpush1.msra.mxu0 0.0
    %1333 = vmatprep.subr.mxu0 0.0
    %1334 = vmatpush1.msra.mxu0 0.0
    %1335 = vmatprep.subr.mxu0 0.0
    %1336 = vmatpush1.msra.mxu0 0.0
    %1337 = vmatprep.subr.mxu0 0.0
    %1338 = vmatpush1.msra.mxu0 0.0
    %1339 = vmatprep.subr.mxu0 0.0
    %1340 = vmatpush1.msra.mxu0 0.0
    %1341 = vmatprep.mubr.f32.mxu0 0.0
    %1342 = vmatmul.mubr.f32.gmra.mrb[0].mxu0 %v265
    %v1343 = vpop.f32.mrb[0].mxu0
    %v1344 = vadd.f32 0.0, %v1343
    %v1345 = vpop.f32.mrb[0].mxu0
    %1346 = vdwg.mxu0
    %v1347 = vadd.f32 %v1164, %v1273
    %v1348 = vadd.f32 %v1347, %v103
    %v1349 = vmax.f32 %v1344, 1e-30
    %v1350 = vlog2.pop %v1349
    %v1351 = vmul.f32 %v1350, 0.6931472
    %v1352 = vadd.f32 %v1348, %v1351
    %vm1353 = vcmp.ne.f32.partialorder %v1166, 0.0
    %v1354 = vsel %vm1353, 1, 0
    %v1355 = vlaneseq
    %v1356 = vshrl.u32 %v1355, 7
    %v1357 = vsub.s32 0, %v1356
    %v1358 = vrot.slane %v1354, %v1357
    %vm1359 = vcmp.eq.s32.totalorder %v1358, 1
    %v1360 = vsel %vm1359, %v1352, %v1159
    %v1361 = vsel %vm1262, %v1159, %v1360
    %v1362 = vsel %vm1359, %v1173, %v1160
    %s1363 = sadd.s32 %s96, 6
    %p1364 = scmp.eq.s32.totalorder %s1363, 0
    %s1365 = scalar_lea.vmem [#allocation6], 48
    %v1366 = vld [vmem:[%s1365] sm:$0xff]
    %v1367 = vld [vmem:[#allocation9 + $0x6] sm:$0x1]
    %v1368 = vld [vmem:[#allocation11 + $0x6] sm:$0x1]
    %v1369 = vlaneseq
    %v1370 = vshrl.u32 %v1369, 7
    %v1371 = vsub.s32 0, %v1370
    %v1372 = vrot.slane %v1367, %v1371
    %vm1373 = vcmp.eq.s32.totalorder %v108, %v1372
    %v1374 = vsel %vm1373, 1, 0
    %v1375 = vcvt.s32.f32 %v1374
    %v1376 = vmul.f32 %v1366, %v1375
    %v1377 = vsel %vm158, %v1376, 0.0
    %v1378 = vrot.slane %v1377, 4
    %v1379 = vadd.f32 %v1377, %v1378
    %v1380 = vrot.slane %v1379, 2
    %v1381 = vadd.f32 %v1379, %v1380
    %v1382 = vrot.slane %v1381, 1
    %v1383 = vadd.f32 %v1381, %v1382
    %1384 = vmatprep.subr.mxu0 0.0
    %1385 = vmatpush1.msra.mxu0 %v1173
    %1386 = vmatprep.subr.mxu0 0.0
    %1387 = vmatpush1.msra.mxu0 0.0
    %1388 = vmatprep.subr.mxu0 0.0
    %1389 = vmatpush1.msra.mxu0 0.0
    %1390 = vmatprep.subr.mxu0 0.0
    %1391 = vmatpush1.msra.mxu0 0.0
    %1392 = vmatprep.subr.mxu0 0.0
    %1393 = vmatpush1.msra.mxu0 0.0
    %1394 = vmatprep.subr.mxu0 0.0
    %1395 = vmatpush1.msra.mxu0 0.0
    %1396 = vmatprep.subr.mxu0 0.0
    %1397 = vmatpush1.msra.mxu0 0.0
    %1398 = vmatprep.subr.mxu0 0.0
    %1399 = vmatpush1.msra.mxu0 0.0
    %1400 = vmatprep.subr.mxu0 0.0
    %1401 = vmatpush1.msra.mxu0 0.0
    %1402 = vmatprep.subr.mxu0 0.0
    %1403 = vmatpush1.msra.mxu0 0.0
    %1404 = vmatprep.subr.mxu0 0.0
    %1405 = vmatpush1.msra.mxu0 0.0
    %1406 = vmatprep.subr.mxu0 0.0
    %1407 = vmatpush1.msra.mxu0 0.0
    %1408 = vmatprep.subr.mxu0 0.0
    %1409 = vmatpush1.msra.mxu0 0.0
    %1410 = vmatprep.subr.mxu0 0.0
    %1411 = vmatpush1.msra.mxu0 0.0
    %1412 = vmatprep.subr.mxu0 0.0
    %1413 = vmatpush1.msra.mxu0 0.0
    %1414 = vmatprep.subr.mxu0 0.0
    %1415 = vmatpush1.msra.mxu0 0.0
    %1416 = vmatprep.subr.mxu0 0.0
    %1417 = vmatpush1.msra.mxu0 0.0
    %1418 = vmatprep.subr.mxu0 0.0
    %1419 = vmatpush1.msra.mxu0 0.0
    %1420 = vmatprep.subr.mxu0 0.0
    %1421 = vmatpush1.msra.mxu0 0.0
    %1422 = vmatprep.subr.mxu0 0.0
    %1423 = vmatpush1.msra.mxu0 0.0
    %1424 = vmatprep.subr.mxu0 0.0
    %1425 = vmatpush1.msra.mxu0 0.0
    %1426 = vmatprep.subr.mxu0 0.0
    %1427 = vmatpush1.msra.mxu0 0.0
    %1428 = vmatprep.subr.mxu0 0.0
    %1429 = vmatpush1.msra.mxu0 0.0
    %1430 = vmatprep.subr.mxu0 0.0
    %1431 = vmatpush1.msra.mxu0 0.0
    %1432 = vmatprep.subr.mxu0 0.0
    %1433 = vmatpush1.msra.mxu0 0.0
    %1434 = vmatprep.subr.mxu0 0.0
    %1435 = vmatpush1.msra.mxu0 0.0
    %1436 = vmatprep.subr.mxu0 0.0
    %1437 = vmatpush1.msra.mxu0 0.0
    %1438 = vmatprep.subr.mxu0 0.0
    %1439 = vmatpush1.msra.mxu0 0.0
    %1440 = vmatprep.subr.mxu0 0.0
    %1441 = vmatpush1.msra.mxu0 0.0
    %1442 = vmatprep.subr.mxu0 0.0
    %1443 = vmatpush1.msra.mxu0 0.0
    %1444 = vmatprep.subr.mxu0 0.0
    %1445 = vmatpush1.msra.mxu0 0.0
    %1446 = vmatprep.subr.mxu0 0.0
    %1447 = vmatpush1.msra.mxu0 0.0
    %1448 = vmatprep.mubr.f32.mxu0 0.0
    %1449 = vmatmul.mubr.f32.gmra.mrb[0].mxu0 %v167
    %v1450 = vpop.f32.mrb[0].mxu0
    %v1451 = vadd.f32 0.0, %v1450
    %v1452 = vpop.f32.mrb[0].mxu0
    %1453 = vdwg.mxu0
    %v1454 = vmul.f32 %v1451, %v1375
    %v1455 = vsel %vm158, %v1454, 0.0
    %v1456 = vrot.slane %v1455, 4
    %v1457 = vadd.f32 %v1455, %v1456
    %v1458 = vrot.slane %v1457, 2
    %v1459 = vadd.f32 %v1457, %v1458
    %v1460 = vrot.slane %v1459, 1
    %v1461 = vadd.f32 %v1459, %v1460
    %s1462 = scalar_select %p1364, 1, 0
    %v1463 = vstv %s1462
    %vm1464 = vcmp.eq.s32.totalorder %v1463, 1
    %v1465 = vsel %vm1464, 0.0, %v1461
    %v1466 = vadd.f32 %v1383, %v1465
    %v1467 = vmul.f32 %v1466, %v1368
    %v1468 = vadd.f32 %v1266, %v1467
    %v1469 = vsel %vm158, %v1361, -inf
    %v1470 = vrot.slane %v1469, 4
    %v1471 = vmax.f32 %v1469, %v1470
    %v1472 = vrot.slane %v1471, 2
    %v1473 = vmax.f32 %v1471, %v1472
    %v1474 = vrot.slane %v1473, 1
    %v1475 = vmax.f32 %v1473, %v1474
    %v1476 = vsub.f32 %v1361, %v1475
    %v1477 = vmul.f32 %v1476, 1.442695
    %v1478 = vpow.pop %v1477
    %1479 = vmatprep.subr.mxu0 0.0
    %1480 = vmatpush1.msra.mxu0 %v1478
    %1481 = vmatprep.subr.mxu0 0.0
    %1482 = vmatpush1.msra.mxu0 0.0
    %1483 = vmatprep.subr.mxu0 0.0
    %1484 = vmatpush1.msra.mxu0 0.0
    %1485 = vmatprep.subr.mxu0 0.0
    %1486 = vmatpush1.msra.mxu0 0.0
    %1487 = vmatprep.subr.mxu0 0.0
    %1488 = vmatpush1.msra.mxu0 0.0
    %1489 = vmatprep.subr.mxu0 0.0
    %1490 = vmatpush1.msra.mxu0 0.0
    %1491 = vmatprep.subr.mxu0 0.0
    %1492 = vmatpush1.msra.mxu0 0.0
    %1493 = vmatprep.subr.mxu0 0.0
    %1494 = vmatpush1.msra.mxu0 0.0
    %1495 = vmatprep.subr.mxu0 0.0
    %1496 = vmatpush1.msra.mxu0 0.0
    %1497 = vmatprep.subr.mxu0 0.0
    %1498 = vmatpush1.msra.mxu0 0.0
    %1499 = vmatprep.subr.mxu0 0.0
    %1500 = vmatpush1.msra.mxu0 0.0
    %1501 = vmatprep.subr.mxu0 0.0
    %1502 = vmatpush1.msra.mxu0 0.0
    %1503 = vmatprep.subr.mxu0 0.0
    %1504 = vmatpush1.msra.mxu0 0.0
    %1505 = vmatprep.subr.mxu0 0.0
    %1506 = vmatpush1.msra.mxu0 0.0
    %1507 = vmatprep.subr.mxu0 0.0
    %1508 = vmatpush1.msra.mxu0 0.0
    %1509 = vmatprep.subr.mxu0 0.0
    %1510 = vmatpush1.msra.mxu0 0.0
    %1511 = vmatprep.subr.mxu0 0.0
    %1512 = vmatpush1.msra.mxu0 0.0
    %1513 = vmatprep.subr.mxu0 0.0
    %1514 = vmatpush1.msra.mxu0 0.0
    %1515 = vmatprep.subr.mxu0 0.0
    %1516 = vmatpush1.msra.mxu0 0.0
    %1517 = vmatprep.subr.mxu0 0.0
    %1518 = vmatpush1.msra.mxu0 0.0
    %1519 = vmatprep.subr.mxu0 0.0
    %1520 = vmatpush1.msra.mxu0 0.0
    %1521 = vmatprep.subr.mxu0 0.0
    %1522 = vmatpush1.msra.mxu0 0.0
    %1523 = vmatprep.subr.mxu0 0.0
    %1524 = vmatpush1.msra.mxu0 0.0
    %1525 = vmatprep.subr.mxu0 0.0
    %1526 = vmatpush1.msra.mxu0 0.0
    %1527 = vmatprep.subr.mxu0 0.0
    %1528 = vmatpush1.msra.mxu0 0.0
    %1529 = vmatprep.subr.mxu0 0.0
    %1530 = vmatpush1.msra.mxu0 0.0
    %1531 = vmatprep.subr.mxu0 0.0
    %1532 = vmatpush1.msra.mxu0 0.0
    %1533 = vmatprep.subr.mxu0 0.0
    %1534 = vmatpush1.msra.mxu0 0.0
    %1535 = vmatprep.subr.mxu0 0.0
    %1536 = vmatpush1.msra.mxu0 0.0
    %1537 = vmatprep.subr.mxu0 0.0
    %1538 = vmatpush1.msra.mxu0 0.0
    %1539 = vmatprep.subr.mxu0 0.0
    %1540 = vmatpush1.msra.mxu0 0.0
    %1541 = vmatprep.subr.mxu0 0.0
    %1542 = vmatpush1.msra.mxu0 0.0
    %1543 = vmatprep.mubr.f32.mxu0 0.0
    %1544 = vmatmul.mubr.f32.gmra.mrb[0].mxu0 %v265
    %v1545 = vpop.f32.mrb[0].mxu0
    %v1546 = vadd.f32 0.0, %v1545
    %v1547 = vpop.f32.mrb[0].mxu0
    %1548 = vdwg.mxu0
    %v1549 = vadd.f32 %v1366, %v1475
    %v1550 = vadd.f32 %v1549, %v103
    %v1551 = vmax.f32 %v1546, 1e-30
    %v1552 = vlog2.pop %v1551
    %v1553 = vmul.f32 %v1552, 0.6931472
    %v1554 = vadd.f32 %v1550, %v1553
    %vm1555 = vcmp.ne.f32.partialorder %v1368, 0.0
    %v1556 = vsel %vm1555, 1, 0
    %v1557 = vlaneseq
    %v1558 = vshrl.u32 %v1557, 7
    %v1559 = vsub.s32 0, %v1558
    %v1560 = vrot.slane %v1556, %v1559
    %vm1561 = vcmp.eq.s32.totalorder %v1560, 1
    %v1562 = vsel %vm1561, %v1554, %v1361
    %v1563 = vsel %vm1464, %v1361, %v1562
    %v1564 = vsel %vm1561, %v1375, %v1362
    %s1565 = sadd.s32 %s96, 7
    %p1566 = scmp.eq.s32.totalorder %s1565, 0
    %s1567 = scalar_lea.vmem [#allocation6], 56
    %v1568 = vld [vmem:[%s1567] sm:$0xff]
    %v1569 = vld [vmem:[#allocation9 + $0x7] sm:$0x1]
    %v1570 = vld [vmem:[#allocation11 + $0x7] sm:$0x1]
    %v1571 = vlaneseq
    %v1572 = vshrl.u32 %v1571, 7
    %v1573 = vsub.s32 0, %v1572
    %v1574 = vrot.slane %v1569, %v1573
    %vm1575 = vcmp.eq.s32.totalorder %v108, %v1574
    %v1576 = vsel %vm1575, 1, 0
    %v1577 = vcvt.s32.f32 %v1576
    %v1578 = vmul.f32 %v1568, %v1577
    %v1579 = vsel %vm158, %v1578, 0.0
    %v1580 = vrot.slane %v1579, 4
    %v1581 = vadd.f32 %v1579, %v1580
    %v1582 = vrot.slane %v1581, 2
    %v1583 = vadd.f32 %v1581, %v1582
    %v1584 = vrot.slane %v1583, 1
    %v1585 = vadd.f32 %v1583, %v1584
    %1586 = vmatprep.subr.mxu0 0.0
    %1587 = vmatpush1.msra.mxu0 %v1375
    %1588 = vmatprep.subr.mxu0 0.0
    %1589 = vmatpush1.msra.mxu0 0.0
    %1590 = vmatprep.subr.mxu0 0.0
    %1591 = vmatpush1.msra.mxu0 0.0
    %1592 = vmatprep.subr.mxu0 0.0
    %1593 = vmatpush1.msra.mxu0 0.0
    %1594 = vmatprep.subr.mxu0 0.0
    %1595 = vmatpush1.msra.mxu0 0.0
    %1596 = vmatprep.subr.mxu0 0.0
    %1597 = vmatpush1.msra.mxu0 0.0
    %1598 = vmatprep.subr.mxu0 0.0
    %1599 = vmatpush1.msra.mxu0 0.0
    %1600 = vmatprep.subr.mxu0 0.0
    %1601 = vmatpush1.msra.mxu0 0.0
    %1602 = vmatprep.subr.mxu0 0.0
    %1603 = vmatpush1.msra.mxu0 0.0
    %1604 = vmatprep.subr.mxu0 0.0
    %1605 = vmatpush1.msra.mxu0 0.0
    %1606 = vmatprep.subr.mxu0 0.0
    %1607 = vmatpush1.msra.mxu0 0.0
    %1608 = vmatprep.subr.mxu0 0.0
    %1609 = vmatpush1.msra.mxu0 0.0
    %1610 = vmatprep.subr.mxu0 0.0
    %1611 = vmatpush1.msra.mxu0 0.0
    %1612 = vmatprep.subr.mxu0 0.0
    %1613 = vmatpush1.msra.mxu0 0.0
    %1614 = vmatprep.subr.mxu0 0.0
    %1615 = vmatpush1.msra.mxu0 0.0
    %1616 = vmatprep.subr.mxu0 0.0
    %1617 = vmatpush1.msra.mxu0 0.0
    %1618 = vmatprep.subr.mxu0 0.0
    %1619 = vmatpush1.msra.mxu0 0.0
    %1620 = vmatprep.subr.mxu0 0.0
    %1621 = vmatpush1.msra.mxu0 0.0
    %1622 = vmatprep.subr.mxu0 0.0
    %1623 = vmatpush1.msra.mxu0 0.0
    %1624 = vmatprep.subr.mxu0 0.0
    %1625 = vmatpush1.msra.mxu0 0.0
    %1626 = vmatprep.subr.mxu0 0.0
    %1627 = vmatpush1.msra.mxu0 0.0
    %1628 = vmatprep.subr.mxu0 0.0
    %1629 = vmatpush1.msra.mxu0 0.0
    %1630 = vmatprep.subr.mxu0 0.0
    %1631 = vmatpush1.msra.mxu0 0.0
    %1632 = vmatprep.subr.mxu0 0.0
    %1633 = vmatpush1.msra.mxu0 0.0
    %1634 = vmatprep.subr.mxu0 0.0
    %1635 = vmatpush1.msra.mxu0 0.0
    %1636 = vmatprep.subr.mxu0 0.0
    %1637 = vmatpush1.msra.mxu0 0.0
    %1638 = vmatprep.subr.mxu0 0.0
    %1639 = vmatpush1.msra.mxu0 0.0
    %1640 = vmatprep.subr.mxu0 0.0
    %1641 = vmatpush1.msra.mxu0 0.0
    %1642 = vmatprep.subr.mxu0 0.0
    %1643 = vmatpush1.msra.mxu0 0.0
    %1644 = vmatprep.subr.mxu0 0.0
    %1645 = vmatpush1.msra.mxu0 0.0
    %1646 = vmatprep.subr.mxu0 0.0
    %1647 = vmatpush1.msra.mxu0 0.0
    %1648 = vmatprep.subr.mxu0 0.0
    %1649 = vmatpush1.msra.mxu0 0.0
    %1650 = vmatprep.mubr.f32.mxu0 0.0
    %1651 = vmatmul.mubr.f32.gmra.mrb[0].mxu0 %v167
    %v1652 = vpop.f32.mrb[0].mxu0
    %v1653 = vadd.f32 0.0, %v1652
    %v1654 = vpop.f32.mrb[0].mxu0
    %1655 = vdwg.mxu0
    %v1656 = vmul.f32 %v1653, %v1577
    %v1657 = vsel %vm158, %v1656, 0.0
    %v1658 = vrot.slane %v1657, 4
    %v1659 = vadd.f32 %v1657, %v1658
    %v1660 = vrot.slane %v1659, 2
    %v1661 = vadd.f32 %v1659, %v1660
    %v1662 = vrot.slane %v1661, 1
    %v1663 = vadd.f32 %v1661, %v1662
    %s1664 = scalar_select %p1566, 1, 0
    %v1665 = vstv %s1664
    %vm1666 = vcmp.eq.s32.totalorder %v1665, 1
    %v1667 = vsel %vm1666, 0.0, %v1663
    %v1668 = vadd.f32 %v1585, %v1667
    %v1669 = vmul.f32 %v1668, %v1570
    %v1670 = vadd.f32 %v1468, %v1669
    %v1671 = vsel %vm158, %v1563, -inf
    %v1672 = vrot.slane %v1671, 4
    %v1673 = vmax.f32 %v1671, %v1672
    %v1674 = vrot.slane %v1673, 2
    %v1675 = vmax.f32 %v1673, %v1674
    %v1676 = vrot.slane %v1675, 1
    %v1677 = vmax.f32 %v1675, %v1676
    %v1678 = vsub.f32 %v1563, %v1677
    %v1679 = vmul.f32 %v1678, 1.442695
    %v1680 = vpow.pop %v1679
    %1681 = vmatprep.subr.mxu0 0.0
    %1682 = vmatpush1.msra.mxu0 %v1680
    %1683 = vmatprep.subr.mxu0 0.0
    %1684 = vmatpush1.msra.mxu0 0.0
    %1685 = vmatprep.subr.mxu0 0.0
    %1686 = vmatpush1.msra.mxu0 0.0
    %1687 = vmatprep.subr.mxu0 0.0
    %1688 = vmatpush1.msra.mxu0 0.0
    %1689 = vmatprep.subr.mxu0 0.0
    %1690 = vmatpush1.msra.mxu0 0.0
    %1691 = vmatprep.subr.mxu0 0.0
    %1692 = vmatpush1.msra.mxu0 0.0
    %1693 = vmatprep.subr.mxu0 0.0
    %1694 = vmatpush1.msra.mxu0 0.0
    %1695 = vmatprep.subr.mxu0 0.0
    %1696 = vmatpush1.msra.mxu0 0.0
    %1697 = vmatprep.subr.mxu0 0.0
    %1698 = vmatpush1.msra.mxu0 0.0
    %1699 = vmatprep.subr.mxu0 0.0
    %1700 = vmatpush1.msra.mxu0 0.0
    %1701 = vmatprep.subr.mxu0 0.0
    %1702 = vmatpush1.msra.mxu0 0.0
    %1703 = vmatprep.subr.mxu0 0.0
    %1704 = vmatpush1.msra.mxu0 0.0
    %1705 = vmatprep.subr.mxu0 0.0
    %1706 = vmatpush1.msra.mxu0 0.0
    %1707 = vmatprep.subr.mxu0 0.0
    %1708 = vmatpush1.msra.mxu0 0.0
    %1709 = vmatprep.subr.mxu0 0.0
    %1710 = vmatpush1.msra.mxu0 0.0
    %1711 = vmatprep.subr.mxu0 0.0
    %1712 = vmatpush1.msra.mxu0 0.0
    %1713 = vmatprep.subr.mxu0 0.0
    %1714 = vmatpush1.msra.mxu0 0.0
    %1715 = vmatprep.subr.mxu0 0.0
    %1716 = vmatpush1.msra.mxu0 0.0
    %1717 = vmatprep.subr.mxu0 0.0
    %1718 = vmatpush1.msra.mxu0 0.0
    %1719 = vmatprep.subr.mxu0 0.0
    %1720 = vmatpush1.msra.mxu0 0.0
    %1721 = vmatprep.subr.mxu0 0.0
    %1722 = vmatpush1.msra.mxu0 0.0
    %1723 = vmatprep.subr.mxu0 0.0
    %1724 = vmatpush1.msra.mxu0 0.0
    %1725 = vmatprep.subr.mxu0 0.0
    %1726 = vmatpush1.msra.mxu0 0.0
    %1727 = vmatprep.subr.mxu0 0.0
    %1728 = vmatpush1.msra.mxu0 0.0
    %1729 = vmatprep.subr.mxu0 0.0
    %1730 = vmatpush1.msra.mxu0 0.0
    %1731 = vmatprep.subr.mxu0 0.0
    %1732 = vmatpush1.msra.mxu0 0.0
    %1733 = vmatprep.subr.mxu0 0.0
    %1734 = vmatpush1.msra.mxu0 0.0
    %1735 = vmatprep.subr.mxu0 0.0
    %1736 = vmatpush1.msra.mxu0 0.0
    %1737 = vmatprep.subr.mxu0 0.0
    %1738 = vmatpush1.msra.mxu0 0.0
    %1739 = vmatprep.subr.mxu0 0.0
    %1740 = vmatpush1.msra.mxu0 0.0
    %1741 = vmatprep.subr.mxu0 0.0
    %1742 = vmatpush1.msra.mxu0 0.0
    %1743 = vmatprep.subr.mxu0 0.0
    %1744 = vmatpush1.msra.mxu0 0.0
    %1745 = vmatprep.mubr.f32.mxu0 0.0
    %1746 = vmatmul.mubr.f32.gmra.mrb[0].mxu0 %v265
    %v1747 = vpop.f32.mrb[0].mxu0
    %v1748 = vadd.f32 0.0, %v1747
    %v1749 = vpop.f32.mrb[0].mxu0
    %1750 = vdwg.mxu0
    %v1751 = vadd.f32 %v1568, %v1677
    %v1752 = vadd.f32 %v1751, %v103
    %v1753 = vmax.f32 %v1748, 1e-30
    %v1754 = vlog2.pop %v1753
    %v1755 = vmul.f32 %v1754, 0.6931472
    %v1756 = vadd.f32 %v1752, %v1755
    %vm1757 = vcmp.ne.f32.partialorder %v1570, 0.0
    %v1758 = vsel %vm1757, 1, 0
    %v1759 = vlaneseq
    %v1760 = vshrl.u32 %v1759, 7
    %v1761 = vsub.s32 0, %v1760
    %v1762 = vrot.slane %v1758, %v1761
    %vm1763 = vcmp.eq.s32.totalorder %v1762, 1
    %v1764 = vsel %vm1763, %v1756, %v1563
    %v1765 = vsel %vm1666, %v1563, %v1764
    %v1766 = vsel %vm1763, %v1577, %v1564
    %1767 = vst.msk [vmem:[#allocation2] sm:$0xff] %vm158, %v1765
    %1768 = vst.msk [vmem:[#allocation3] sm:$0xff] %vm158, %v1577
    %1769 = vst.msk [vmem:[#allocation4] sm:$0xff] %vm158, %v1766
    %vm1770 = vcmask 8192
    %1771 = vst.msk [vmem:[#allocation5] sm:$0x1] %vm1770, %v1670
    // Predicated region
    $region54: #{tpu_custom_call.1} parent=1 // pred_check
      %p1772 = pneg %p109
    $region55: #{tpu_custom_call.1} parent=1 // pred_check_branch
      %1774 = sbr.rel (%p1772) target = $region57
    $region56: #{tpu_custom_call.1} parent=1 // pred_region
      %1776 = vset.pattern.permute.xlu0 0
      %1777 = vperm.xlu0 %1776, %v99
      %v1778 = vpop.permute.xlu0 %1777
      %v1780 = vmul.f32 %v1766, %v1778
      %v1781 = vsel %vm158, %v1780, 0.0
      %v1782 = vrot.slane %v1781, 4
      %v1783 = vadd.f32 %v1781, %v1782
      %v1784 = vrot.slane %v1783, 2
      %v1785 = vadd.f32 %v1783, %v1784
      %v1786 = vrot.slane %v1785, 1
      %v1787 = vadd.f32 %v1785, %v1786
      %v1788 = vadd.f32 %v1670, %v1787
      %v1789 = vadd.f32 %v1765, %v1778
      %v1790 = vsel %vm158, %v1789, -inf
      %v1791 = vrot.slane %v1790, 4
      %v1792 = vmax.f32 %v1790, %v1791
      %v1793 = vrot.slane %v1792, 2
      %v1794 = vmax.f32 %v1792, %v1793
      %v1795 = vrot.slane %v1794, 1
      %v1796 = vmax.f32 %v1794, %v1795
      %v1797 = vsub.f32 %v1789, %v1796
      %v1798 = vmul.f32 %v1797, 1.442695
      %v1799 = vpow.pop %v1798
      %v1800 = vsel %vm158, %v1799, 0.0
      %v1801 = vrot.slane %v1800, 4
      %v1802 = vadd.f32 %v1800, %v1801
      %v1803 = vrot.slane %v1802, 2
      %v1804 = vadd.f32 %v1802, %v1803
      %v1805 = vrot.slane %v1804, 1
      %v1806 = vadd.f32 %v1804, %v1805
      %v1807 = vlog2.pop %v1806
      %v1808 = vmul.f32 %v1807, 0.6931472
      %v1809 = vadd.f32 %v1796, %v1808
      %v1810 = vsub.f32 %v1788, %v1809
      %1811 = vst.msk [vmem:[#allocation17] sm:$0x1] %vm1770, %v1810
    $region57: #{tpu_custom_call.1} parent=1 // pred_fallthru
      _
    // Predicated region
    $region58: #{tpu_custom_call.1} parent=1 // pred_check
      _
    $region59: #{tpu_custom_call.1} parent=1 // pred_check_branch
      %1813 = sbr.rel (0) target = $region61
    $region60: #{tpu_custom_call.1} parent=1 // pred_region
      %s1815 = ssub.s32 16, 16
      %1816 = vsyncadd [#allocation8], %s1815
      %s1818 = sshll.u32 [#allocation17], 4
      %s1819 = int_to_ptr.vmem [resolvable:$true] %s1818
      %1821 = dma.vmem_to_hbm [thread:$0]  %s1819, 16, %s6, [#allocation8]
    $region61: #{tpu_custom_call.1} parent=1 // pred_fallthru
      _
    // Predicated region
    $region62: #{tpu_custom_call.1} parent=1 // pred_check
      _
    $region63: #{tpu_custom_call.1} parent=1 // pred_check_branch
      %1823 = sbr.rel (0) target = $region65
    $region64: #{tpu_custom_call.1} parent=1 // pred_region
      %1824 = dma.done [#allocation8], 16
    $region65: #{tpu_custom_call.1} parent=1 // pred_fallthru
      _
    %1825 = vsyncpa [#allocation7], 1
    %1826 = vsyncpa [#allocation10], 1
    %1827 = vsyncpa [#allocation13], 1
    %1828 = vsyncpa [#allocation16], 1
    %1829 = vsyncpa [#allocation8], 1

</llo_original>
